<compile_context>
chip_gen: v7x
topology: tpu7x:2x2x1
jax: 0.10.0
libtpu: 0.0.40
codegen_flags: <defaults>
</compile_context>

<pallas_src>
import functools
import math

import numpy as np
import jax
import jax.numpy as jnp
from jax import lax
from jax.experimental import pallas as pl
from jax.experimental.pallas import tpu as pltpu

# ----------------------------------------------------------------------------
# Config (small, deterministic)
# ----------------------------------------------------------------------------
IN_MV_CHANNELS = 4
OUT_MV_CHANNELS = 4
HIDDEN_MV_CHANNELS = 4
IN_S_CHANNELS = 8
OUT_S_CHANNELS = 8
HIDDEN_S_CHANNELS = 8
NUM_HEADS = 2
MV_DIM = 16  # PGA(3,0,1) multivector components

# Blade ordering (GATr convention):
# [1, e0, e1, e2, e3, e01, e02, e03, e12, e13, e23, e012, e013, e023, e123, e0123]
_GRADE_SLICES = ([0], [1, 2, 3, 4], [5, 6, 7, 8, 9, 10], [11, 12, 13, 14], [15])
_INNER_PRODUCT_IDX = np.array([0, 2, 3, 4, 8, 9, 10, 14])  # blades without e0

D_IN = IN_MV_CHANNELS * MV_DIM + IN_S_CHANNELS            # 72
DQK = HIDDEN_MV_CHANNELS * 8 + HIDDEN_S_CHANNELS          # 40  (q/k feature width per head)
DV = HIDDEN_MV_CHANNELS * MV_DIM + HIDDEN_S_CHANNELS      # 72  (value feature width per head)
HPAD = 128                                                # per-head padded feature width (lane multiple)
D_OUT = OUT_MV_CHANNELS * MV_DIM + OUT_S_CHANNELS         # 72
D_OUT_PAD = 128                                           # padded kernel-output width


# ----------------------------------------------------------------------------
# EquiLinear parameter construction (offline, plain numpy/JAX glue)
# ----------------------------------------------------------------------------
def make_equi_basis() -> np.ndarray:
    """The 9 Pin(3,0,1)-equivariant linear maps on 16-dim multivectors:
    5 grade projections + 4 maps  x -> e0 * <x>_k  (k = 0..3)."""
    basis = np.zeros((9, 16, 16), dtype=np.float32)
    for g, idxs in enumerate(_GRADE_SLICES):
        for i in idxs:
            basis[g, i, i] = 1.0
    basis[5, 1, 0] = 1.0                               # e0 * <x>_0
    for src, dst in zip((2, 3, 4), (5, 6, 7)):         # e0 * <x>_1
        basis[6, dst, src] = 1.0
    for src, dst in zip((8, 9, 10), (11, 12, 13)):     # e0 * <x>_2
        basis[7, dst, src] = 1.0
    basis[8, 15, 14] = 1.0                             # e0 * <x>_3
    return basis


def make_equilinear_params(key, in_mv, out_mv, in_s, out_s, basis):
    """Bake an EquiLinear layer into a dense (D_in, D_out) matrix + bias.

    Input features  = [flatten(mv_in)  (in_mv*16),  scalars_in  (in_s)]
    Output features = [flatten(mv_out) (out_mv*16), scalars_out (out_s)]
    """
    k_mv, k_s2mv, k_mv2s, k_s2s, k_b = jax.random.split(key, 5)
    w_mv = jax.random.normal(k_mv, (out_mv, in_mv, 9), jnp.float32) / math.sqrt(in_mv * 9)
    s2mvs = jax.random.normal(k_s2mv, (out_mv, in_s), jnp.float32) / math.sqrt(in_s)
    mvs2s = jax.random.normal(k_mv2s, (out_s, in_mv), jnp.float32) / math.sqrt(in_mv)
    s2s = jax.random.normal(k_s2s, (out_s, in_s), jnp.float32) / math.sqrt(in_s)
    bias_s = 0.01 * jax.random.normal(k_b, (out_s,), jnp.float32)

    d_in = in_mv * 16 + in_s
    d_out = out_mv * 16 + out_s
    W = jnp.zeros((d_in, d_out), jnp.float32)
    # mv -> mv (equivariant channel mixing through the 9-element basis)
    blk = jnp.einsum("oia,ajk->ikoj", w_mv, jnp.asarray(basis)).reshape(in_mv * 16, out_mv * 16)
    W = W.at[: in_mv * 16, : out_mv * 16].set(blk)
    # scalars -> scalar (grade-0) component of each output mv channel
    W = W.at[in_mv * 16:, jnp.arange(out_mv) * 16].set(s2mvs.T)
    # scalar component of each input mv channel -> output scalars
    W = W.at[jnp.arange(in_mv) * 16, out_mv * 16:].set(mvs2s.T)
    # scalars -> scalars
    W = W.at[in_mv * 16:, out_mv * 16:].set(s2s.T)
    bias = jnp.zeros((d_out,), jnp.float32).at[out_mv * 16:].set(bias_s)
    return W, bias


def bake_fused_params(w_qkv, b_qkv, w_out, b_out):
    """Permute/pad EquiLinear weights into the fused-kernel layout.

    * W_q/W_k : (D_IN, NUM_HEADS*HPAD).  For head h, columns [h*HPAD : h*HPAD+DQK]
      hold the geometric-attention q/k features in the order
      [ch0 inner-product blades (8) | ch1 | ch2 | ch3 | hidden scalars (8)].
      The 1/sqrt(DQK) attention scale is folded into W_q / b_q.
    * W_v     : (D_IN, NUM_HEADS*HPAD).  Columns [h*HPAD : h*HPAD+DV] hold the
      full flattened hidden multivectors + hidden scalars of head h.
    * W_o     : (NUM_HEADS*HPAD, D_OUT_PAD).  Rows permuted to the per-head
      value layout above (so the heads-concat/rearrange becomes a plain sum of
      per-head matmuls); output columns zero-padded to 128 lanes.
    All padding columns/rows are zero, so they contribute nothing.
    """
    w_qkv = np.asarray(w_qkv)
    b_qkv = np.asarray(b_qkv)
    w_out = np.asarray(w_out)
    b_out = np.asarray(b_out)
    H, CM, CS = NUM_HEADS, HIDDEN_MV_CHANNELS, HIDDEN_S_CHANNELS
    mv_cols = 3 * H * CM * MV_DIM

    def qkv_mv_col(t, h, c, blade):
        return ((t * H + h) * CM + c) * MV_DIM + blade

    def qkv_s_col(t, h, s):
        return mv_cols + (t * H + h) * CS + s

    def qk_cols(t, h):
        cols = [qkv_mv_col(t, h, c, int(b)) for c in range(CM) for b in _INNER_PRODUCT_IDX]
        cols += [qkv_s_col(t, h, s) for s in range(CS)]
        return np.array(cols)

    def v_cols(h):
        cols = [qkv_mv_col(2, h, c, b) for c in range(CM) for b in range(MV_DIM)]
        cols += [qkv_s_col(2, h, s) for s in range(CS)]
        return np.array(cols)

    scale = 1.0 / math.sqrt(DQK)
    wq = np.zeros((D_IN, H * HPAD), np.float32)
    wk = np.zeros((D_IN, H * HPAD), np.float32)
    wv = np.zeros((D_IN, H * HPAD), np.float32)
    bq = np.zeros((1, H * HPAD), np.float32)
    bk = np.zeros((1, H * HPAD), np.float32)
    bv = np.zeros((1, H * HPAD), np.float32)
    for h in range(H):
        qc, kc, vc = qk_cols(0, h), qk_cols(1, h), v_cols(h)
        wq[:, h * HPAD: h * HPAD + DQK] = w_qkv[:, qc] * scale
        bq[0, h * HPAD: h * HPAD + DQK] = b_qkv[qc] * scale
        wk[:, h * HPAD: h * HPAD + DQK] = w_qkv[:, kc]
        bk[0, h * HPAD: h * HPAD + DQK] = b_qkv[kc]
        wv[:, h * HPAD: h * HPAD + DV] = w_qkv[:, vc]
        bv[0, h * HPAD: h * HPAD + DV] = b_qkv[vc]

    wo = np.zeros((H * HPAD, D_OUT_PAD), np.float32)
    bo = np.zeros((1, D_OUT_PAD), np.float32)
    bo[0, :D_OUT] = b_out
    for h in range(H):
        rows = [(h * CM + c) * MV_DIM + b for c in range(CM) for b in range(MV_DIM)]
        rows += [H * CM * MV_DIM + h * CS + s for s in range(CS)]
        wo[h * HPAD: h * HPAD + DV, :D_OUT] = w_out[np.array(rows), :]

    return dict(
        wq=jnp.asarray(wq), bq=jnp.asarray(bq),
        wk=jnp.asarray(wk), bk=jnp.asarray(bk),
        wv=jnp.asarray(wv), bv=jnp.asarray(bv),
        wo=jnp.asarray(wo), bo=jnp.asarray(bo),
    )


# ----------------------------------------------------------------------------
# The fused Pallas kernel
# ----------------------------------------------------------------------------
def _fused_self_attention_kernel(x_ref, wq_ref, bq_ref, wk_ref, bk_ref,
                                 wv_ref, bv_ref, wo_ref, bo_ref, o_ref,
                                 *, batch, n_items):
    """One-shot forward: QKV projection -> per-(batch, head) softmax attention
    over items -> output projection.  Everything stays in VMEM / vregs.

    Shapes (all f32):
      x  : (batch*n_items, D_IN)
      wq/wk/wv : (D_IN, NUM_HEADS*HPAD), bq/bk/bv : (1, NUM_HEADS*HPAD)
      wo : (NUM_HEADS*HPAD, D_OUT_PAD),  bo : (1, D_OUT_PAD)
      o  : (batch*n_items, D_OUT_PAD)
    """
    x = x_ref[...]
    q = jnp.dot(x, wq_ref[...], preferred_element_type=jnp.float32) + bq_ref[...]
    k = jnp.dot(x, wk_ref[...], preferred_element_type=jnp.float32) + bk_ref[...]
    v = jnp.dot(x, wv_ref[...], preferred_element_type=jnp.float32) + bv_ref[...]
    wo = wo_ref[...]
    bo = bo_ref[...]

    # Small static loops (batch * heads = 4 here) -> fully unrolled, all slices
    # are static and tile-aligned (rows multiple of 8, lanes multiple of 128).
    for b in range(batch):
        r0, r1 = b * n_items, (b + 1) * n_items
        acc = jnp.zeros((n_items, D_OUT_PAD), jnp.float32)
        for h in range(NUM_HEADS):
            c0, c1 = h * HPAD, (h + 1) * HPAD
            qh = q[r0:r1, c0:c1]          # (N, HPAD), scale already folded in
            kh = k[r0:r1, c0:c1]
            vh = v[r0:r1, c0:c1]
            # TODO(synk): additive attention_mask support not wired; module is run with attention_mask=None.
            logits = lax.dot_general(qh, kh, (((1,), (1,)), ((), ())),
                                     preferred_element_type=jnp.float32)      # (N, N)
            m = jnp.max(logits, axis=-1, keepdims=True)
            p = jnp.exp(logits - m)
            p = p * pl.reciprocal(jnp.sum(p, axis=-1, keepdims=True), approx=True)
            oh = jnp.dot(p, vh, preferred_element_type=jnp.float32)           # (N, HPAD)
            # Output EquiLinear, head h slice (heads-concat baked into row layout of wo).
            acc = acc + jnp.dot(oh, wo[c0:c1, :], preferred_element_type=jnp.float32)
        o_ref[r0:r1, :] = (acc + bo).astype(o_ref.dtype)


# ----------------------------------------------------------------------------
# SelfAttention.forward wrapper
# ----------------------------------------------------------------------------
def self_attention_forward(baked, multivectors, scalars):
    batch, n_items = multivectors.shape[0], multivectors.shape[1]
    x = jnp.concatenate(
        [multivectors.reshape(batch, n_items, IN_MV_CHANNELS * MV_DIM), scalars], axis=-1
    ).reshape(batch * n_items, D_IN)

    kern = functools.partial(_fused_self_attention_kernel, batch=batch, n_items=n_items)
    vmem_spec = lambda: pl.BlockSpec(memory_space=pltpu.MemorySpace.VMEM)
    y = pl.pallas_call(
        kern,
        out_shape=jax.ShapeDtypeStruct((batch * n_items, D_OUT_PAD), jnp.float32),
        in_specs=[vmem_spec() for _ in range(9)],
        out_specs=vmem_spec(),
    )(x, baked["wq"], baked["bq"], baked["wk"], baked["bk"],
      baked["wv"], baked["bv"], baked["wo"], baked["bo"])

    # Strip the lane padding, then split mv / scalar outputs.
    y = y[:, :D_OUT].reshape(batch, n_items, D_OUT)
    outputs_mv = y[..., : OUT_MV_CHANNELS * MV_DIM].reshape(batch, n_items, OUT_MV_CHANNELS, MV_DIM)
    outputs_s = y[..., OUT_MV_CHANNELS * MV_DIM:]
    # pos_encoding: config.pos_encoding=False -> identity; dropout_prob=None -> no GradeDropout.
    return outputs_mv, outputs_s


# ----------------------------------------------------------------------------
# Pure-JAX reference (unbaked params) for correctness check
# ----------------------------------------------------------------------------
def reference_forward(raw, multivectors, scalars):
    w_qkv, b_qkv, w_out, b_out = raw["w_qkv"], raw["b_qkv"], raw["w_out"], raw["b_out"]
    B, N = multivectors.shape[0], multivectors.shape[1]
    H, CM, CS = NUM_HEADS, HIDDEN_MV_CHANNELS, HIDDEN_S_CHANNELS
    x = jnp.concatenate([multivectors.reshape(B, N, IN_MV_CHANNELS * MV_DIM), scalars], -1)
    qkv = x @ w_qkv + b_qkv
    mv_flat = 3 * H * CM * MV_DIM
    qkv_mv = jnp.transpose(qkv[..., :mv_flat].reshape(B, N, 3, H, CM, MV_DIM), (2, 0, 3, 1, 4, 5))
    qkv_s = jnp.transpose(qkv[..., mv_flat:].reshape(B, N, 3, H, CS), (2, 0, 3, 1, 4))
    q_mv, k_mv, v_mv = qkv_mv[0], qkv_mv[1], qkv_mv[2]
    q_s, k_s, v_s = qkv_s[0], qkv_s[1], qkv_s[2]
    inner = jnp.asarray(_INNER_PRODUCT_IDX)
    q_feat = jnp.concatenate([q_mv[..., inner].reshape(B, H, N, CM * 8), q_s], -1)
    k_feat = jnp.concatenate([k_mv[..., inner].reshape(B, H, N, CM * 8), k_s], -1)
    v_feat = jnp.concatenate([v_mv.reshape(B, H, N, CM * MV_DIM), v_s], -1)
    logits = jnp.einsum("bhnd,bhmd->bhnm", q_feat, k_feat) / math.sqrt(q_feat.shape[-1])
    p = jax.nn.softmax(logits, axis=-1)
    hfeat = jnp.einsum("bhnm,bhmd->bhnd", p, v_feat)
    h_mv = jnp.transpose(hfeat[..., : CM * MV_DIM].reshape(B, H, N, CM, MV_DIM),
                         (0, 2, 1, 3, 4)).reshape(B, N, H * CM, MV_DIM)
    h_s = jnp.transpose(hfeat[..., CM * MV_DIM:], (0, 2, 1, 3)).reshape(B, N, H * CS)
    y = jnp.concatenate([h_mv.reshape(B, N, -1), h_s], -1) @ w_out + b_out
    out_mv = y[..., : OUT_MV_CHANNELS * MV_DIM].reshape(B, N, OUT_MV_CHANNELS, MV_DIM)
    out_s = y[..., OUT_MV_CHANNELS * MV_DIM:]
    return out_mv, out_s


if __name__ == "__main__":
    key = jax.random.PRNGKey(0)
    k_in_mv, k_in_s, k_qkv, k_out = jax.random.split(key, 4)

    basis = make_equi_basis()
    w_qkv, b_qkv = make_equilinear_params(
        k_qkv,
        IN_MV_CHANNELS, 3 * NUM_HEADS * HIDDEN_MV_CHANNELS,
        IN_S_CHANNELS, 3 * NUM_HEADS * HIDDEN_S_CHANNELS,
        basis,
    )
    w_out, b_out = make_equilinear_params(
        k_out,
        NUM_HEADS * HIDDEN_MV_CHANNELS, OUT_MV_CHANNELS,
        NUM_HEADS * HIDDEN_S_CHANNELS, OUT_S_CHANNELS,
        basis,
    )
    baked = bake_fused_params(w_qkv, b_qkv, w_out, b_out)

    B, N = 2, 8
    multivectors = jax.random.normal(k_in_mv, (B, N, IN_MV_CHANNELS, MV_DIM), jnp.float32)
    scalars = jax.random.normal(k_in_s, (B, N, IN_S_CHANNELS), jnp.float32)

    out_mv, out_s = jax.jit(self_attention_forward)(baked, multivectors, scalars)
    jax.block_until_ready((out_mv, out_s))

    assert out_mv.shape == (B, N, OUT_MV_CHANNELS, MV_DIM)
    assert out_s.shape == (B, N, OUT_S_CHANNELS)
    assert bool(jnp.all(jnp.isfinite(out_mv))) and bool(jnp.all(jnp.isfinite(out_s)))

    ref_mv, ref_s = reference_forward(
        dict(w_qkv=w_qkv, b_qkv=b_qkv, w_out=w_out, b_out=b_out), multivectors, scalars)
    assert bool(jnp.allclose(out_mv, ref_mv, atol=5e-3, rtol=5e-3))
    assert bool(jnp.allclose(out_s, ref_s, atol=5e-3, rtol=5e-3))

    print("KERNEL_OK")
</pallas_src>

<mosaic_0001>
module attributes {stable_mosaic.version = 11 : i64} {
  func.func @_fused_self_attention_kernel(%arg0: memref<16x72xf32, #tpu.memory_space<vmem>>, %arg1: memref<72x256xf32, #tpu.memory_space<vmem>>, %arg2: memref<1x256xf32, #tpu.memory_space<vmem>>, %arg3: memref<72x256xf32, #tpu.memory_space<vmem>>, %arg4: memref<1x256xf32, #tpu.memory_space<vmem>>, %arg5: memref<72x256xf32, #tpu.memory_space<vmem>>, %arg6: memref<1x256xf32, #tpu.memory_space<vmem>>, %arg7: memref<256x128xf32, #tpu.memory_space<vmem>>, %arg8: memref<1x128xf32, #tpu.memory_space<vmem>>, %arg9: memref<16x128xf32, #tpu.memory_space<vmem>>) attributes {dimension_semantics = [], scalar_prefetch = 0 : i64, scratch_operands = 0 : i64, tpu.core_type = #tpu.core_type<tc>} {
    %c0 = arith.constant 0 : index
    %c0_0 = arith.constant 0 : index
    %0 = vector.load %arg0[%c0, %c0_0] : memref<16x72xf32, #tpu.memory_space<vmem>>, vector<16x72xf32>
    %c0_1 = arith.constant 0 : index
    %c0_2 = arith.constant 0 : index
    %1 = vector.load %arg1[%c0_1, %c0_2] : memref<72x256xf32, #tpu.memory_space<vmem>>, vector<72x256xf32>
    %cst = arith.constant dense<0.000000e+00> : vector<16x256xf32>
    %2 = tpu.matmul %0, %1, %cst {dimension_numbers = #tpu.dot_dimension_numbers<[1], [0], [0], [1], [0, 0, 1, 1], [], []>} : vector<16x72xf32>, vector<72x256xf32>, vector<16x256xf32> -> vector<16x256xf32>
    %c0_3 = arith.constant 0 : index
    %c0_4 = arith.constant 0 : index
    %3 = vector.load %arg2[%c0_3, %c0_4] : memref<1x256xf32, #tpu.memory_space<vmem>>, vector<1x256xf32>
    %4 = vector.broadcast %3 : vector<1x256xf32> to vector<16x256xf32>
    %5 = arith.addf %2, %4 : vector<16x256xf32>
    %c0_5 = arith.constant 0 : index
    %c0_6 = arith.constant 0 : index
    %6 = vector.load %arg3[%c0_5, %c0_6] : memref<72x256xf32, #tpu.memory_space<vmem>>, vector<72x256xf32>
    %cst_7 = arith.constant dense<0.000000e+00> : vector<16x256xf32>
    %7 = tpu.matmul %0, %6, %cst_7 {dimension_numbers = #tpu.dot_dimension_numbers<[1], [0], [0], [1], [0, 0, 1, 1], [], []>} : vector<16x72xf32>, vector<72x256xf32>, vector<16x256xf32> -> vector<16x256xf32>
    %c0_8 = arith.constant 0 : index
    %c0_9 = arith.constant 0 : index
    %8 = vector.load %arg4[%c0_8, %c0_9] : memref<1x256xf32, #tpu.memory_space<vmem>>, vector<1x256xf32>
    %9 = vector.broadcast %8 : vector<1x256xf32> to vector<16x256xf32>
    %10 = arith.addf %7, %9 : vector<16x256xf32>
    %c0_10 = arith.constant 0 : index
    %c0_11 = arith.constant 0 : index
    %11 = vector.load %arg5[%c0_10, %c0_11] : memref<72x256xf32, #tpu.memory_space<vmem>>, vector<72x256xf32>
    %cst_12 = arith.constant dense<0.000000e+00> : vector<16x256xf32>
    %12 = tpu.matmul %0, %11, %cst_12 {dimension_numbers = #tpu.dot_dimension_numbers<[1], [0], [0], [1], [0, 0, 1, 1], [], []>} : vector<16x72xf32>, vector<72x256xf32>, vector<16x256xf32> -> vector<16x256xf32>
    %c0_13 = arith.constant 0 : index
    %c0_14 = arith.constant 0 : index
    %13 = vector.load %arg6[%c0_13, %c0_14] : memref<1x256xf32, #tpu.memory_space<vmem>>, vector<1x256xf32>
    %14 = vector.broadcast %13 : vector<1x256xf32> to vector<16x256xf32>
    %15 = arith.addf %12, %14 : vector<16x256xf32>
    %c0_15 = arith.constant 0 : index
    %c0_16 = arith.constant 0 : index
    %16 = vector.load %arg7[%c0_15, %c0_16] : memref<256x128xf32, #tpu.memory_space<vmem>>, vector<256x128xf32>
    %c0_17 = arith.constant 0 : index
    %c0_18 = arith.constant 0 : index
    %17 = vector.load %arg8[%c0_17, %c0_18] : memref<1x128xf32, #tpu.memory_space<vmem>>, vector<1x128xf32>
    %cst_19 = arith.constant 0.000000e+00 : f32
    %18 = vector.broadcast %cst_19 : f32 to vector<8x128xf32>
    %19 = vector.extract_strided_slice %5 {offsets = [0, 0], sizes = [8, 128], strides = [1, 1]} : vector<16x256xf32> to vector<8x128xf32>
    %20 = vector.extract_strided_slice %10 {offsets = [0, 0], sizes = [8, 128], strides = [1, 1]} : vector<16x256xf32> to vector<8x128xf32>
    %21 = vector.extract_strided_slice %15 {offsets = [0, 0], sizes = [8, 128], strides = [1, 1]} : vector<16x256xf32> to vector<8x128xf32>
    %cst_20 = arith.constant dense<0.000000e+00> : vector<8x8xf32>
    %22 = tpu.matmul %19, %20, %cst_20 {dimension_numbers = #tpu.dot_dimension_numbers<[1], [1], [0], [0], [0, 0, 1, 0], [], []>} : vector<8x128xf32>, vector<8x128xf32>, vector<8x8xf32> -> vector<8x8xf32>
    %cst_21 = arith.constant dense<0xFF800000> : vector<8xf32>
    %23 = vector.multi_reduction <maximumf>, %22, %cst_21 [1] : vector<8x8xf32> to vector<8xf32>
    %24 = vector.shape_cast %23 : vector<8xf32> to vector<8x1xf32>
    %25 = vector.broadcast %24 : vector<8x1xf32> to vector<8x8xf32>
    %26 = arith.subf %22, %25 : vector<8x8xf32>
    %27 = math.exp %26 : vector<8x8xf32>
    %cst_22 = arith.constant dense<0.000000e+00> : vector<8xf32>
    %28 = vector.multi_reduction <add>, %27, %cst_22 [1] : vector<8x8xf32> to vector<8xf32>
    %29 = vector.shape_cast %28 : vector<8xf32> to vector<8x1xf32>
    %30 = tpu.reciprocal %29 {approx = true} : vector<8x1xf32> -> vector<8x1xf32>
    %31 = vector.broadcast %30 : vector<8x1xf32> to vector<8x8xf32>
    %32 = arith.mulf %27, %31 : vector<8x8xf32>
    %cst_23 = arith.constant dense<0.000000e+00> : vector<8x128xf32>
    %33 = tpu.matmul %32, %21, %cst_23 {dimension_numbers = #tpu.dot_dimension_numbers<[1], [0], [0], [1], [0, 0, 1, 1], [], []>} : vector<8x8xf32>, vector<8x128xf32>, vector<8x128xf32> -> vector<8x128xf32>
    %34 = vector.extract_strided_slice %16 {offsets = [0, 0], sizes = [128, 128], strides = [1, 1]} : vector<256x128xf32> to vector<128x128xf32>
    %cst_24 = arith.constant dense<0.000000e+00> : vector<8x128xf32>
    %35 = tpu.matmul %33, %34, %cst_24 {dimension_numbers = #tpu.dot_dimension_numbers<[1], [0], [0], [1], [0, 0, 1, 1], [], []>} : vector<8x128xf32>, vector<128x128xf32>, vector<8x128xf32> -> vector<8x128xf32>
    %36 = arith.addf %18, %35 : vector<8x128xf32>
    %37 = vector.extract_strided_slice %5 {offsets = [0, 128], sizes = [8, 128], strides = [1, 1]} : vector<16x256xf32> to vector<8x128xf32>
    %38 = vector.extract_strided_slice %10 {offsets = [0, 128], sizes = [8, 128], strides = [1, 1]} : vector<16x256xf32> to vector<8x128xf32>
    %39 = vector.extract_strided_slice %15 {offsets = [0, 128], sizes = [8, 128], strides = [1, 1]} : vector<16x256xf32> to vector<8x128xf32>
    %cst_25 = arith.constant dense<0.000000e+00> : vector<8x8xf32>
    %40 = tpu.matmul %37, %38, %cst_25 {dimension_numbers = #tpu.dot_dimension_numbers<[1], [1], [0], [0], [0, 0, 1, 0], [], []>} : vector<8x128xf32>, vector<8x128xf32>, vector<8x8xf32> -> vector<8x8xf32>
    %cst_26 = arith.constant dense<0xFF800000> : vector<8xf32>
    %41 = vector.multi_reduction <maximumf>, %40, %cst_26 [1] : vector<8x8xf32> to vector<8xf32>
    %42 = vector.shape_cast %41 : vector<8xf32> to vector<8x1xf32>
    %43 = vector.broadcast %42 : vector<8x1xf32> to vector<8x8xf32>
    %44 = arith.subf %40, %43 : vector<8x8xf32>
    %45 = math.exp %44 : vector<8x8xf32>
    %cst_27 = arith.constant dense<0.000000e+00> : vector<8xf32>
    %46 = vector.multi_reduction <add>, %45, %cst_27 [1] : vector<8x8xf32> to vector<8xf32>
    %47 = vector.shape_cast %46 : vector<8xf32> to vector<8x1xf32>
    %48 = tpu.reciprocal %47 {approx = true} : vector<8x1xf32> -> vector<8x1xf32>
    %49 = vector.broadcast %48 : vector<8x1xf32> to vector<8x8xf32>
    %50 = arith.mulf %45, %49 : vector<8x8xf32>
    %cst_28 = arith.constant dense<0.000000e+00> : vector<8x128xf32>
    %51 = tpu.matmul %50, %39, %cst_28 {dimension_numbers = #tpu.dot_dimension_numbers<[1], [0], [0], [1], [0, 0, 1, 1], [], []>} : vector<8x8xf32>, vector<8x128xf32>, vector<8x128xf32> -> vector<8x128xf32>
    %52 = vector.extract_strided_slice %16 {offsets = [128, 0], sizes = [128, 128], strides = [1, 1]} : vector<256x128xf32> to vector<128x128xf32>
    %cst_29 = arith.constant dense<0.000000e+00> : vector<8x128xf32>
    %53 = tpu.matmul %51, %52, %cst_29 {dimension_numbers = #tpu.dot_dimension_numbers<[1], [0], [0], [1], [0, 0, 1, 1], [], []>} : vector<8x128xf32>, vector<128x128xf32>, vector<8x128xf32> -> vector<8x128xf32>
    %54 = arith.addf %36, %53 : vector<8x128xf32>
    %55 = vector.broadcast %17 : vector<1x128xf32> to vector<8x128xf32>
    %56 = arith.addf %54, %55 : vector<8x128xf32>
    %c0_30 = arith.constant 0 : index
    %c0_31 = arith.constant 0 : index
    %57 = vector.load %arg9[%c0_30, %c0_31] : memref<16x128xf32, #tpu.memory_space<vmem>>, vector<8x128xf32>
    tpu.vector_store %arg9[%c0_30, %c0_31], %56 {strides = array<i32>} : memref<16x128xf32, #tpu.memory_space<vmem>>, vector<8x128xf32>,
    %cst_32 = arith.constant 0.000000e+00 : f32
    %58 = vector.broadcast %cst_32 : f32 to vector<8x128xf32>
    %59 = vector.extract_strided_slice %5 {offsets = [8, 0], sizes = [8, 128], strides = [1, 1]} : vector<16x256xf32> to vector<8x128xf32>
    %60 = vector.extract_strided_slice %10 {offsets = [8, 0], sizes = [8, 128], strides = [1, 1]} : vector<16x256xf32> to vector<8x128xf32>
    %61 = vector.extract_strided_slice %15 {offsets = [8, 0], sizes = [8, 128], strides = [1, 1]} : vector<16x256xf32> to vector<8x128xf32>
    %cst_33 = arith.constant dense<0.000000e+00> : vector<8x8xf32>
    %62 = tpu.matmul %59, %60, %cst_33 {dimension_numbers = #tpu.dot_dimension_numbers<[1], [1], [0], [0], [0, 0, 1, 0], [], []>} : vector<8x128xf32>, vector<8x128xf32>, vector<8x8xf32> -> vector<8x8xf32>
    %cst_34 = arith.constant dense<0xFF800000> : vector<8xf32>
    %63 = vector.multi_reduction <maximumf>, %62, %cst_34 [1] : vector<8x8xf32> to vector<8xf32>
    %64 = vector.shape_cast %63 : vector<8xf32> to vector<8x1xf32>
    %65 = vector.broadcast %64 : vector<8x1xf32> to vector<8x8xf32>
    %66 = arith.subf %62, %65 : vector<8x8xf32>
    %67 = math.exp %66 : vector<8x8xf32>
    %cst_35 = arith.constant dense<0.000000e+00> : vector<8xf32>
    %68 = vector.multi_reduction <add>, %67, %cst_35 [1] : vector<8x8xf32> to vector<8xf32>
    %69 = vector.shape_cast %68 : vector<8xf32> to vector<8x1xf32>
    %70 = tpu.reciprocal %69 {approx = true} : vector<8x1xf32> -> vector<8x1xf32>
    %71 = vector.broadcast %70 : vector<8x1xf32> to vector<8x8xf32>
    %72 = arith.mulf %67, %71 : vector<8x8xf32>
    %cst_36 = arith.constant dense<0.000000e+00> : vector<8x128xf32>
    %73 = tpu.matmul %72, %61, %cst_36 {dimension_numbers = #tpu.dot_dimension_numbers<[1], [0], [0], [1], [0, 0, 1, 1], [], []>} : vector<8x8xf32>, vector<8x128xf32>, vector<8x128xf32> -> vector<8x128xf32>
    %74 = vector.extract_strided_slice %16 {offsets = [0, 0], sizes = [128, 128], strides = [1, 1]} : vector<256x128xf32> to vector<128x128xf32>
    %cst_37 = arith.constant dense<0.000000e+00> : vector<8x128xf32>
    %75 = tpu.matmul %73, %74, %cst_37 {dimension_numbers = #tpu.dot_dimension_numbers<[1], [0], [0], [1], [0, 0, 1, 1], [], []>} : vector<8x128xf32>, vector<128x128xf32>, vector<8x128xf32> -> vector<8x128xf32>
    %76 = arith.addf %58, %75 : vector<8x128xf32>
    %77 = vector.extract_strided_slice %5 {offsets = [8, 128], sizes = [8, 128], strides = [1, 1]} : vector<16x256xf32> to vector<8x128xf32>
    %78 = vector.extract_strided_slice %10 {offsets = [8, 128], sizes = [8, 128], strides = [1, 1]} : vector<16x256xf32> to vector<8x128xf32>
    %79 = vector.extract_strided_slice %15 {offsets = [8, 128], sizes = [8, 128], strides = [1, 1]} : vector<16x256xf32> to vector<8x128xf32>
    %cst_38 = arith.constant dense<0.000000e+00> : vector<8x8xf32>
    %80 = tpu.matmul %77, %78, %cst_38 {dimension_numbers = #tpu.dot_dimension_numbers<[1], [1], [0], [0], [0, 0, 1, 0], [], []>} : vector<8x128xf32>, vector<8x128xf32>, vector<8x8xf32> -> vector<8x8xf32>
    %cst_39 = arith.constant dense<0xFF800000> : vector<8xf32>
    %81 = vector.multi_reduction <maximumf>, %80, %cst_39 [1] : vector<8x8xf32> to vector<8xf32>
    %82 = vector.shape_cast %81 : vector<8xf32> to vector<8x1xf32>
    %83 = vector.broadcast %82 : vector<8x1xf32> to vector<8x8xf32>
    %84 = arith.subf %80, %83 : vector<8x8xf32>
    %85 = math.exp %84 : vector<8x8xf32>
    %cst_40 = arith.constant dense<0.000000e+00> : vector<8xf32>
    %86 = vector.multi_reduction <add>, %85, %cst_40 [1] : vector<8x8xf32> to vector<8xf32>
    %87 = vector.shape_cast %86 : vector<8xf32> to vector<8x1xf32>
    %88 = tpu.reciprocal %87 {approx = true} : vector<8x1xf32> -> vector<8x1xf32>
    %89 = vector.broadcast %88 : vector<8x1xf32> to vector<8x8xf32>
    %90 = arith.mulf %85, %89 : vector<8x8xf32>
    %cst_41 = arith.constant dense<0.000000e+00> : vector<8x128xf32>
    %91 = tpu.matmul %90, %79, %cst_41 {dimension_numbers = #tpu.dot_dimension_numbers<[1], [0], [0], [1], [0, 0, 1, 1], [], []>} : vector<8x8xf32>, vector<8x128xf32>, vector<8x128xf32> -> vector<8x128xf32>
    %92 = vector.extract_strided_slice %16 {offsets = [128, 0], sizes = [128, 128], strides = [1, 1]} : vector<256x128xf32> to vector<128x128xf32>
    %cst_42 = arith.constant dense<0.000000e+00> : vector<8x128xf32>
    %93 = tpu.matmul %91, %92, %cst_42 {dimension_numbers = #tpu.dot_dimension_numbers<[1], [0], [0], [1], [0, 0, 1, 1], [], []>} : vector<8x128xf32>, vector<128x128xf32>, vector<8x128xf32> -> vector<8x128xf32>
    %94 = arith.addf %76, %93 : vector<8x128xf32>
    %95 = vector.broadcast %17 : vector<1x128xf32> to vector<8x128xf32>
    %96 = arith.addf %94, %95 : vector<8x128xf32>
    %c8 = arith.constant 8 : index
    %c0_43 = arith.constant 0 : index
    %97 = vector.load %arg9[%c8, %c0_43] : memref<16x128xf32, #tpu.memory_space<vmem>>, vector<8x128xf32>
    tpu.vector_store %arg9[%c8, %c0_43], %96 {strides = array<i32>} : memref<16x128xf32, #tpu.memory_space<vmem>>, vector<8x128xf32>,
    return
  }
}

</mosaic_0001>

<llo_original>
// kernel: self_attention_forward.1
$region0: #{self_attention_forward.1}
  #allocation0 [shape = 'u32[]', space=smem, size = 0x4, offset = 0x4, fixed_abs, tag = 'smem constant byte address 0x4 - core index']
  #allocation1 [shape = 'u32[144,128]{1,0:T(1,128)}', space=vmem, size = 0x12000, scoped, tag = 'internal scratch']
  %s0 = inlined_call_operand.vmem [shape: f32[16,72], index: 0, kind: input, shape index: {}]
  %s1 = inlined_call_operand.vmem [shape: f32[72,256], index: 1, kind: input, shape index: {}]
  %s2 = inlined_call_operand.vmem [shape: f32[1,256], index: 2, kind: input, shape index: {}]
  %s3 = inlined_call_operand.hbm [shape: f32[72,256], index: 3, kind: input, shape index: {}]
  %s4 = inlined_call_operand.hbm [shape: f32[1,256], index: 4, kind: input, shape index: {}]
  %s5 = inlined_call_operand.hbm [shape: f32[72,256], index: 5, kind: input, shape index: {}]
  %s6 = inlined_call_operand.hbm [shape: f32[1,256], index: 6, kind: input, shape index: {}]
  %s7 = inlined_call_operand.hbm [shape: f32[256,128], index: 7, kind: input, shape index: {}]
  %s8 = inlined_call_operand.hbm [shape: f32[1,128], index: 8, kind: input, shape index: {}]
  %s9 = inlined_call_operand.vmem [shape: f32[16,128], index: 9, kind: output, shape index: {}]
  %s10 = sld [smem:[#allocation0]]
  $region70: #{self_attention_forward.1} parent=0
    _
  %s12 = ssub.s32 1, %s10
  %s13 = scalar_select 0, %s12, %s10
  $region1: #{self_attention_forward.1} parent=0
    #allocation2 [shape = 'u8[73728]{0}', space=vmem, size = 0x12000, scoped, tag = 'input window, operand 3, single buffered']
    #allocation3 [shape = 's32[1]{0}', space=sflag, size = 0x4, scoped, tag = 'scoped memory for self_attention_forward.1']
    #allocation4 [shape = 'u8[1024]{0}', space=vmem, size = 0x400, scoped, tag = 'input window, operand 4, single buffered']
    #allocation5 [shape = 's32[1]{0}', space=sflag, size = 0x4, scoped, tag = 'scoped memory for self_attention_forward.1']
    #allocation6 [shape = 'u8[73728]{0}', space=vmem, size = 0x12000, scoped, tag = 'input window, operand 5, single buffered']
    #allocation7 [shape = 'u8[1024]{0}', space=vmem, size = 0x400, scoped, tag = 'input window, operand 6, single buffered']
    #allocation8 [shape = 's32[1]{0}', space=sflag, size = 0x4, scoped, tag = 'scoped memory for self_attention_forward.1']
    #allocation9 [shape = 'u8[131072]{0}', space=vmem, size = 0x20000, scoped, tag = 'input window, operand 7, single buffered']
    #allocation10 [shape = 'u8[512]{0}', space=vmem, size = 0x400, scoped, tag = 'input window, operand 8, single buffered']
    #allocation11 [shape = 's32[1]{0}', space=sflag, size = 0x4, scoped, tag = 'scoped memory for self_attention_forward.1']
    %14 = vsyncpa [#allocation3], 0
    %15 = vsyncpa [#allocation5], 0
    %16 = vsyncpa [#allocation8], 0
    %17 = vsyncpa [#allocation11], 0
    // Predicated region
    $region2: #{self_attention_forward.1} parent=1 // pred_check
      _
    $region3: #{self_attention_forward.1} parent=1 // pred_check_branch
      %19 = sbr.rel (0) target = $region5
    $region4: #{self_attention_forward.1} parent=1 // pred_region
      _
    $region5: #{self_attention_forward.1} parent=1 // pred_fallthru
      _
    // Predicated region
    $region6: #{self_attention_forward.1} parent=1 // pred_check
      _
    $region7: #{self_attention_forward.1} parent=1 // pred_check_branch
      %21 = sbr.rel (0) target = $region9
    $region8: #{self_attention_forward.1} parent=1 // pred_region
      _
    $region9: #{self_attention_forward.1} parent=1 // pred_fallthru
      _
    // Predicated region
    $region10: #{self_attention_forward.1} parent=1 // pred_check
      _
    $region11: #{self_attention_forward.1} parent=1 // pred_check_branch
      %23 = sbr.rel (0) target = $region13
    $region12: #{self_attention_forward.1} parent=1 // pred_region
      _
    $region13: #{self_attention_forward.1} parent=1 // pred_fallthru
      _
    // Predicated region
    $region14: #{self_attention_forward.1} parent=1 // pred_check
      _
    $region15: #{self_attention_forward.1} parent=1 // pred_check_branch
      %25 = sbr.rel (0) target = $region17
    $region16: #{self_attention_forward.1} parent=1 // pred_region
      %s27 = ssub.s32 2304, 2304
      %28 = vsyncadd [#allocation3], %s27
      %s29 = sshll.u32 [#allocation2], 4
      %s30 = int_to_ptr.vmem [resolvable:$true] %s29
      %35 = dma.hbm_to_vmem [thread:$0]  %s3, 2304, %s30, [#allocation3], 256, 256, 16
    $region17: #{self_attention_forward.1} parent=1 // pred_fallthru
      _
    // Predicated region
    $region18: #{self_attention_forward.1} parent=1 // pred_check
      _
    $region19: #{self_attention_forward.1} parent=1 // pred_check_branch
      %37 = sbr.rel (0) target = $region21
    $region20: #{self_attention_forward.1} parent=1 // pred_region
      %s39 = ssub.s32 32, 32
      %40 = vsyncadd [#allocation5], %s39
      %s42 = sshll.u32 [#allocation4], 4
      %s43 = int_to_ptr.vmem [resolvable:$true] %s42
      %45 = dma.hbm_to_vmem [thread:$0]  %s4, 32, %s43, [#allocation5]
    $region21: #{self_attention_forward.1} parent=1 // pred_fallthru
      _
    // Predicated region
    $region22: #{self_attention_forward.1} parent=1 // pred_check
      _
    $region23: #{self_attention_forward.1} parent=1 // pred_check_branch
      %47 = sbr.rel (0) target = $region25
    $region24: #{self_attention_forward.1} parent=1 // pred_region
      %s49 = ssub.s32 2304, 2304
      %50 = vsyncadd [#allocation5], %s49
      %s51 = sshll.u32 [#allocation6], 4
      %s52 = int_to_ptr.vmem [resolvable:$true] %s51
      %57 = dma.hbm_to_vmem [thread:$0]  %s5, 2304, %s52, [#allocation5], 256, 256, 16
    $region25: #{self_attention_forward.1} parent=1 // pred_fallthru
      _
    // Predicated region
    $region26: #{self_attention_forward.1} parent=1 // pred_check
      _
    $region27: #{self_attention_forward.1} parent=1 // pred_check_branch
      %59 = sbr.rel (0) target = $region29
    $region28: #{self_attention_forward.1} parent=1 // pred_region
      %s61 = ssub.s32 32, 32
      %62 = vsyncadd [#allocation8], %s61
      %s64 = sshll.u32 [#allocation7], 4
      %s65 = int_to_ptr.vmem [resolvable:$true] %s64
      %67 = dma.hbm_to_vmem [thread:$0]  %s6, 32, %s65, [#allocation8]
    $region29: #{self_attention_forward.1} parent=1 // pred_fallthru
      _
    // Predicated region
    $region30: #{self_attention_forward.1} parent=1 // pred_check
      _
    $region31: #{self_attention_forward.1} parent=1 // pred_check_branch
      %69 = sbr.rel (0) target = $region33
    $region32: #{self_attention_forward.1} parent=1 // pred_region
      %s71 = ssub.s32 4096, 4096
      %72 = vsyncadd [#allocation8], %s71
      %s73 = sshll.u32 [#allocation9], 4
      %s74 = int_to_ptr.vmem [resolvable:$true] %s73
      %79 = dma.hbm_to_vmem [thread:$0]  %s7, 4096, %s74, [#allocation8], 128, 128, 8
    $region33: #{self_attention_forward.1} parent=1 // pred_fallthru
      _
    // Predicated region
    $region34: #{self_attention_forward.1} parent=1 // pred_check
      _
    $region35: #{self_attention_forward.1} parent=1 // pred_check_branch
      %81 = sbr.rel (0) target = $region37
    $region36: #{self_attention_forward.1} parent=1 // pred_region
      %s83 = ssub.s32 16, 16
      %84 = vsyncadd [#allocation11], %s83
      %s86 = sshll.u32 [#allocation10], 4
      %s87 = int_to_ptr.vmem [resolvable:$true] %s86
      %89 = dma.hbm_to_vmem [thread:$0]  %s8, 16, %s87, [#allocation11]
    $region37: #{self_attention_forward.1} parent=1 // pred_fallthru
      _
    // Predicated region
    $region38: #{self_attention_forward.1} parent=1 // pred_check
      _
    $region39: #{self_attention_forward.1} parent=1 // pred_check_branch
      %91 = sbr.rel (0) target = $region41
    $region40: #{self_attention_forward.1} parent=1 // pred_region
      %92 = dma.done [#allocation3], 2304
    $region41: #{self_attention_forward.1} parent=1 // pred_fallthru
      _
    // Predicated region
    $region42: #{self_attention_forward.1} parent=1 // pred_check
      _
    $region43: #{self_attention_forward.1} parent=1 // pred_check_branch
      %94 = sbr.rel (0) target = $region45
    $region44: #{self_attention_forward.1} parent=1 // pred_region
      %95 = dma.done [#allocation5], 32
    $region45: #{self_attention_forward.1} parent=1 // pred_fallthru
      _
    // Predicated region
    $region46: #{self_attention_forward.1} parent=1 // pred_check
      _
    $region47: #{self_attention_forward.1} parent=1 // pred_check_branch
      %97 = sbr.rel (0) target = $region49
    $region48: #{self_attention_forward.1} parent=1 // pred_region
      %98 = dma.done [#allocation5], 2304
    $region49: #{self_attention_forward.1} parent=1 // pred_fallthru
      _
    // Predicated region
    $region50: #{self_attention_forward.1} parent=1 // pred_check
      _
    $region51: #{self_attention_forward.1} parent=1 // pred_check_branch
      %100 = sbr.rel (0) target = $region53
    $region52: #{self_attention_forward.1} parent=1 // pred_region
      %101 = dma.done [#allocation8], 32
    $region53: #{self_attention_forward.1} parent=1 // pred_fallthru
      _
    // Predicated region
    $region54: #{self_attention_forward.1} parent=1 // pred_check
      _
    $region55: #{self_attention_forward.1} parent=1 // pred_check_branch
      %103 = sbr.rel (0) target = $region57
    $region56: #{self_attention_forward.1} parent=1 // pred_region
      %104 = dma.done [#allocation8], 4096
    $region57: #{self_attention_forward.1} parent=1 // pred_fallthru
      _
    // Predicated region
    $region58: #{self_attention_forward.1} parent=1 // pred_check
      _
    $region59: #{self_attention_forward.1} parent=1 // pred_check_branch
      %106 = sbr.rel (0) target = $region61
    $region60: #{self_attention_forward.1} parent=1 // pred_region
      %107 = dma.done [#allocation11], 16
    $region61: #{self_attention_forward.1} parent=1 // pred_fallthru
      _
    %v108 = vld [vmem:[%s0] sm:$0xff]
    %v109 = vld [vmem:[%s0 + $0x8] sm:$0xff]
    %v110 = vld [vmem:[%s1] sm:$0xff]
    %v111 = vld [vmem:[%s1 + $0x8] sm:$0xff]
    %v112 = vld [vmem:[%s1 + $0x10] sm:$0xff]
    %v113 = vld [vmem:[%s1 + $0x18] sm:$0xff]
    %v114 = vld [vmem:[%s1 + $0x20] sm:$0xff]
    %v115 = vld [vmem:[%s1 + $0x28] sm:$0xff]
    %v116 = vld [vmem:[%s1 + $0x30] sm:$0xff]
    %v117 = vld [vmem:[%s1 + $0x38] sm:$0xff]
    %v118 = vld [vmem:[%s1 + $0x40] sm:$0xff]
    %v119 = vld [vmem:[%s1 + $0x48] sm:$0xff]
    %v120 = vld [vmem:[%s1 + $0x50] sm:$0xff]
    %v121 = vld [vmem:[%s1 + $0x58] sm:$0xff]
    %v122 = vld [vmem:[%s1 + $0x60] sm:$0xff]
    %v123 = vld [vmem:[%s1 + $0x68] sm:$0xff]
    %v124 = vld [vmem:[%s1 + $0x70] sm:$0xff]
    %v125 = vld [vmem:[%s1 + $0x78] sm:$0xff]
    %v126 = vld [vmem:[%s1 + $0x80] sm:$0xff]
    %v127 = vld [vmem:[%s1 + $0x88] sm:$0xff]
    %v128 = vld [vmem:[%s2] sm:$0x3]
    %v130 = vlaneseq
    %v131 = vshrl.u32 %v130, 7
    %v132 = vsub.s32 0, %v131
    %v133 = vrot.slane %v128, %v132
    %v134 = vlaneseq
    %v135 = vshrl.u32 %v134, 7
    %v136 = vsub.s32 1, %v135
    %v137 = vrot.slane %v128, %v136
    %vm140 = vcmask 588800
    %v142 = vsel %vm140, %v108, 0
    %v145 = vsel %vm140, %v109, 0
    %147 = vmatprep.subr.mxu0 %v111
    %148 = vmatpush1.msra.mxu0 %v110
    %149 = vmatprep.subr.mxu0 %v113
    %150 = vmatpush1.msra.mxu0 %v112
    %151 = vmatprep.subr.mxu0 %v115
    %152 = vmatpush1.msra.mxu0 %v114
    %153 = vmatprep.subr.mxu0 %v117
    %154 = vmatpush1.msra.mxu0 %v116
    %155 = vmatprep.subr.mxu0 %v119
    %156 = vmatpush1.msra.mxu0 %v118
    %157 = vmatprep.subr.mxu0 %v121
    %158 = vmatpush1.msra.mxu0 %v120
    %159 = vmatprep.subr.mxu0 %v123
    %160 = vmatpush1.msra.mxu0 %v122
    %161 = vmatprep.subr.mxu0 %v125
    %162 = vmatpush1.msra.mxu0 %v124
    %163 = vmatprep.subr.mxu0 %v127
    %164 = vmatpush1.msra.mxu0 %v126
    %165 = vmatprep.subr.mxu0 0.0
    %166 = vmatpush1.msra.mxu0 0.0
    %167 = vmatprep.subr.mxu0 0.0
    %168 = vmatpush1.msra.mxu0 0.0
    %169 = vmatprep.subr.mxu0 0.0
    %170 = vmatpush1.msra.mxu0 0.0
    %171 = vmatprep.subr.mxu0 0.0
    %172 = vmatpush1.msra.mxu0 0.0
    %173 = vmatprep.subr.mxu0 0.0
    %174 = vmatpush1.msra.mxu0 0.0
    %175 = vmatprep.subr.mxu0 0.0
    %176 = vmatpush1.msra.mxu0 0.0
    %177 = vmatprep.subr.mxu0 0.0
    %178 = vmatpush1.msra.mxu0 0.0
    %179 = vmatprep.subr.mxu0 0.0
    %180 = vmatpush1.msra.mxu0 0.0
    %181 = vmatprep.subr.mxu0 0.0
    %182 = vmatpush1.msra.mxu0 0.0
    %183 = vmatprep.subr.mxu0 0.0
    %184 = vmatpush1.msra.mxu0 0.0
    %185 = vmatprep.subr.mxu0 0.0
    %186 = vmatpush1.msra.mxu0 0.0
    %187 = vmatprep.subr.mxu0 0.0
    %188 = vmatpush1.msra.mxu0 0.0
    %189 = vmatprep.subr.mxu0 0.0
    %190 = vmatpush1.msra.mxu0 0.0
    %191 = vmatprep.subr.mxu0 0.0
    %192 = vmatpush1.msra.mxu0 0.0
    %193 = vmatprep.subr.mxu0 0.0
    %194 = vmatpush1.msra.mxu0 0.0
    %195 = vmatprep.subr.mxu0 0.0
    %196 = vmatpush1.msra.mxu0 0.0
    %197 = vmatprep.subr.mxu0 0.0
    %198 = vmatpush1.msra.mxu0 0.0
    %199 = vmatprep.subr.mxu0 0.0
    %200 = vmatpush1.msra.mxu0 0.0
    %201 = vmatprep.subr.mxu0 0.0
    %202 = vmatpush1.msra.mxu0 0.0
    %203 = vmatprep.subr.mxu0 0.0
    %204 = vmatpush1.msra.mxu0 0.0
    %205 = vmatprep.subr.mxu0 0.0
    %206 = vmatpush1.msra.mxu0 0.0
    %207 = vmatprep.subr.mxu0 0.0
    %208 = vmatpush1.msra.mxu0 0.0
    %209 = vmatprep.subr.mxu0 0.0
    %210 = vmatpush1.msra.mxu0 0.0
    %211 = vmatprep.mubr.f32.mxu0 0.0
    %212 = vmatmul.mubr.f32.gmra.mrb[0].mxu0 %v142
    %v213 = vpop.f32.mrb[0].mxu0
    %v214 = vadd.f32 %v133, %v213
    %v215 = vpop.f32.mrb[0].mxu0
    %v216 = vadd.f32 %v137, %v215
    %217 = vmatprep.mubr.f32.mxu0 0.0
    %218 = vmatmul.mubr.f32.gmra.mrb[0].mxu0 %v145
    %v219 = vpop.f32.mrb[0].mxu0
    %v220 = vadd.f32 %v133, %v219
    %v221 = vpop.f32.mrb[0].mxu0
    %v222 = vadd.f32 %v137, %v221
    %223 = vdwg.mxu0
    %v224 = vld [vmem:[#allocation2] sm:$0xff]
    %v225 = vld [vmem:[#allocation2 + $0x8] sm:$0xff]
    %v226 = vld [vmem:[#allocation2 + $0x10] sm:$0xff]
    %v227 = vld [vmem:[#allocation2 + $0x18] sm:$0xff]
    %v228 = vld [vmem:[#allocation2 + $0x20] sm:$0xff]
    %v229 = vld [vmem:[#allocation2 + $0x28] sm:$0xff]
    %v230 = vld [vmem:[#allocation2 + $0x30] sm:$0xff]
    %v231 = vld [vmem:[#allocation2 + $0x38] sm:$0xff]
    %v232 = vld [vmem:[#allocation2 + $0x40] sm:$0xff]
    %v233 = vld [vmem:[#allocation2 + $0x48] sm:$0xff]
    %v234 = vld [vmem:[#allocation2 + $0x50] sm:$0xff]
    %v235 = vld [vmem:[#allocation2 + $0x58] sm:$0xff]
    %v236 = vld [vmem:[#allocation2 + $0x60] sm:$0xff]
    %v237 = vld [vmem:[#allocation2 + $0x68] sm:$0xff]
    %v238 = vld [vmem:[#allocation2 + $0x70] sm:$0xff]
    %v239 = vld [vmem:[#allocation2 + $0x78] sm:$0xff]
    %v240 = vld [vmem:[#allocation2 + $0x80] sm:$0xff]
    %v241 = vld [vmem:[#allocation2 + $0x88] sm:$0xff]
    %v242 = vld [vmem:[#allocation4] sm:$0x3]
    %v244 = vlaneseq
    %v245 = vshrl.u32 %v244, 7
    %v246 = vsub.s32 0, %v245
    %v247 = vrot.slane %v242, %v246
    %v248 = vlaneseq
    %v249 = vshrl.u32 %v248, 7
    %v250 = vsub.s32 1, %v249
    %v251 = vrot.slane %v242, %v250
    %254 = vmatprep.subr.mxu0 %v225
    %255 = vmatpush1.msra.mxu0 %v224
    %256 = vmatprep.subr.mxu0 %v227
    %257 = vmatpush1.msra.mxu0 %v226
    %258 = vmatprep.subr.mxu0 %v229
    %259 = vmatpush1.msra.mxu0 %v228
    %260 = vmatprep.subr.mxu0 %v231
    %261 = vmatpush1.msra.mxu0 %v230
    %262 = vmatprep.subr.mxu0 %v233
    %263 = vmatpush1.msra.mxu0 %v232
    %264 = vmatprep.subr.mxu0 %v235
    %265 = vmatpush1.msra.mxu0 %v234
    %266 = vmatprep.subr.mxu0 %v237
    %267 = vmatpush1.msra.mxu0 %v236
    %268 = vmatprep.subr.mxu0 %v239
    %269 = vmatpush1.msra.mxu0 %v238
    %270 = vmatprep.subr.mxu0 %v241
    %271 = vmatpush1.msra.mxu0 %v240
    %272 = vmatprep.subr.mxu0 0.0
    %273 = vmatpush1.msra.mxu0 0.0
    %274 = vmatprep.subr.mxu0 0.0
    %275 = vmatpush1.msra.mxu0 0.0
    %276 = vmatprep.subr.mxu0 0.0
    %277 = vmatpush1.msra.mxu0 0.0
    %278 = vmatprep.subr.mxu0 0.0
    %279 = vmatpush1.msra.mxu0 0.0
    %280 = vmatprep.subr.mxu0 0.0
    %281 = vmatpush1.msra.mxu0 0.0
    %282 = vmatprep.subr.mxu0 0.0
    %283 = vmatpush1.msra.mxu0 0.0
    %284 = vmatprep.subr.mxu0 0.0
    %285 = vmatpush1.msra.mxu0 0.0
    %286 = vmatprep.subr.mxu0 0.0
    %287 = vmatpush1.msra.mxu0 0.0
    %288 = vmatprep.subr.mxu0 0.0
    %289 = vmatpush1.msra.mxu0 0.0
    %290 = vmatprep.subr.mxu0 0.0
    %291 = vmatpush1.msra.mxu0 0.0
    %292 = vmatprep.subr.mxu0 0.0
    %293 = vmatpush1.msra.mxu0 0.0
    %294 = vmatprep.subr.mxu0 0.0
    %295 = vmatpush1.msra.mxu0 0.0
    %296 = vmatprep.subr.mxu0 0.0
    %297 = vmatpush1.msra.mxu0 0.0
    %298 = vmatprep.subr.mxu0 0.0
    %299 = vmatpush1.msra.mxu0 0.0
    %300 = vmatprep.subr.mxu0 0.0
    %301 = vmatpush1.msra.mxu0 0.0
    %302 = vmatprep.subr.mxu0 0.0
    %303 = vmatpush1.msra.mxu0 0.0
    %304 = vmatprep.subr.mxu0 0.0
    %305 = vmatpush1.msra.mxu0 0.0
    %306 = vmatprep.subr.mxu0 0.0
    %307 = vmatpush1.msra.mxu0 0.0
    %308 = vmatprep.subr.mxu0 0.0
    %309 = vmatpush1.msra.mxu0 0.0
    %310 = vmatprep.subr.mxu0 0.0
    %311 = vmatpush1.msra.mxu0 0.0
    %312 = vmatprep.subr.mxu0 0.0
    %313 = vmatpush1.msra.mxu0 0.0
    %314 = vmatprep.subr.mxu0 0.0
    %315 = vmatpush1.msra.mxu0 0.0
    %316 = vmatprep.subr.mxu0 0.0
    %317 = vmatpush1.msra.mxu0 0.0
    %318 = vmatprep.mubr.f32.mxu0 0.0
    %319 = vmatmul.mubr.f32.gmra.mrb[0].mxu0 %v142
    %v320 = vpop.f32.mrb[0].mxu0
    %v321 = vadd.f32 %v247, %v320
    %v322 = vpop.f32.mrb[0].mxu0
    %v323 = vadd.f32 %v251, %v322
    %324 = vmatprep.mubr.f32.mxu0 0.0
    %325 = vmatmul.mubr.f32.gmra.mrb[0].mxu0 %v145
    %v326 = vpop.f32.mrb[0].mxu0
    %v327 = vadd.f32 %v247, %v326
    %v328 = vpop.f32.mrb[0].mxu0
    %v329 = vadd.f32 %v251, %v328
    %330 = vdwg.mxu0
    %v331 = vld [vmem:[#allocation6] sm:$0xff]
    %v332 = vld [vmem:[#allocation6 + $0x8] sm:$0xff]
    %v333 = vld [vmem:[#allocation6 + $0x10] sm:$0xff]
    %v334 = vld [vmem:[#allocation6 + $0x18] sm:$0xff]
    %v335 = vld [vmem:[#allocation6 + $0x20] sm:$0xff]
    %v336 = vld [vmem:[#allocation6 + $0x28] sm:$0xff]
    %v337 = vld [vmem:[#allocation6 + $0x30] sm:$0xff]
    %v338 = vld [vmem:[#allocation6 + $0x38] sm:$0xff]
    %v339 = vld [vmem:[#allocation6 + $0x40] sm:$0xff]
    %v340 = vld [vmem:[#allocation6 + $0x48] sm:$0xff]
    %v341 = vld [vmem:[#allocation6 + $0x50] sm:$0xff]
    %v342 = vld [vmem:[#allocation6 + $0x58] sm:$0xff]
    %v343 = vld [vmem:[#allocation6 + $0x60] sm:$0xff]
    %v344 = vld [vmem:[#allocation6 + $0x68] sm:$0xff]
    %v345 = vld [vmem:[#allocation6 + $0x70] sm:$0xff]
    %v346 = vld [vmem:[#allocation6 + $0x78] sm:$0xff]
    %v347 = vld [vmem:[#allocation6 + $0x80] sm:$0xff]
    %v348 = vld [vmem:[#allocation6 + $0x88] sm:$0xff]
    %v349 = vld [vmem:[#allocation7] sm:$0x3]
    %v351 = vlaneseq
    %v352 = vshrl.u32 %v351, 7
    %v353 = vsub.s32 0, %v352
    %v354 = vrot.slane %v349, %v353
    %v355 = vlaneseq
    %v356 = vshrl.u32 %v355, 7
    %v357 = vsub.s32 1, %v356
    %v358 = vrot.slane %v349, %v357
    %361 = vmatprep.subr.mxu0 %v332
    %362 = vmatpush1.msra.mxu0 %v331
    %363 = vmatprep.subr.mxu0 %v334
    %364 = vmatpush1.msra.mxu0 %v333
    %365 = vmatprep.subr.mxu0 %v336
    %366 = vmatpush1.msra.mxu0 %v335
    %367 = vmatprep.subr.mxu0 %v338
    %368 = vmatpush1.msra.mxu0 %v337
    %369 = vmatprep.subr.mxu0 %v340
    %370 = vmatpush1.msra.mxu0 %v339
    %371 = vmatprep.subr.mxu0 %v342
    %372 = vmatpush1.msra.mxu0 %v341
    %373 = vmatprep.subr.mxu0 %v344
    %374 = vmatpush1.msra.mxu0 %v343
    %375 = vmatprep.subr.mxu0 %v346
    %376 = vmatpush1.msra.mxu0 %v345
    %377 = vmatprep.subr.mxu0 %v348
    %378 = vmatpush1.msra.mxu0 %v347
    %379 = vmatprep.subr.mxu0 0.0
    %380 = vmatpush1.msra.mxu0 0.0
    %381 = vmatprep.subr.mxu0 0.0
    %382 = vmatpush1.msra.mxu0 0.0
    %383 = vmatprep.subr.mxu0 0.0
    %384 = vmatpush1.msra.mxu0 0.0
    %385 = vmatprep.subr.mxu0 0.0
    %386 = vmatpush1.msra.mxu0 0.0
    %387 = vmatprep.subr.mxu0 0.0
    %388 = vmatpush1.msra.mxu0 0.0
    %389 = vmatprep.subr.mxu0 0.0
    %390 = vmatpush1.msra.mxu0 0.0
    %391 = vmatprep.subr.mxu0 0.0
    %392 = vmatpush1.msra.mxu0 0.0
    %393 = vmatprep.subr.mxu0 0.0
    %394 = vmatpush1.msra.mxu0 0.0
    %395 = vmatprep.subr.mxu0 0.0
    %396 = vmatpush1.msra.mxu0 0.0
    %397 = vmatprep.subr.mxu0 0.0
    %398 = vmatpush1.msra.mxu0 0.0
    %399 = vmatprep.subr.mxu0 0.0
    %400 = vmatpush1.msra.mxu0 0.0
    %401 = vmatprep.subr.mxu0 0.0
    %402 = vmatpush1.msra.mxu0 0.0
    %403 = vmatprep.subr.mxu0 0.0
    %404 = vmatpush1.msra.mxu0 0.0
    %405 = vmatprep.subr.mxu0 0.0
    %406 = vmatpush1.msra.mxu0 0.0
    %407 = vmatprep.subr.mxu0 0.0
    %408 = vmatpush1.msra.mxu0 0.0
    %409 = vmatprep.subr.mxu0 0.0
    %410 = vmatpush1.msra.mxu0 0.0
    %411 = vmatprep.subr.mxu0 0.0
    %412 = vmatpush1.msra.mxu0 0.0
    %413 = vmatprep.subr.mxu0 0.0
    %414 = vmatpush1.msra.mxu0 0.0
    %415 = vmatprep.subr.mxu0 0.0
    %416 = vmatpush1.msra.mxu0 0.0
    %417 = vmatprep.subr.mxu0 0.0
    %418 = vmatpush1.msra.mxu0 0.0
    %419 = vmatprep.subr.mxu0 0.0
    %420 = vmatpush1.msra.mxu0 0.0
    %421 = vmatprep.subr.mxu0 0.0
    %422 = vmatpush1.msra.mxu0 0.0
    %423 = vmatprep.subr.mxu0 0.0
    %424 = vmatpush1.msra.mxu0 0.0
    %425 = vmatprep.mubr.f32.mxu0 0.0
    %426 = vmatmul.mubr.f32.gmra.mrb[0].mxu0 %v142
    %v427 = vpop.f32.mrb[0].mxu0
    %v428 = vadd.f32 %v354, %v427
    %v429 = vpop.f32.mrb[0].mxu0
    %v430 = vadd.f32 %v358, %v429
    %431 = vmatprep.mubr.f32.mxu0 0.0
    %432 = vmatmul.mubr.f32.gmra.mrb[0].mxu0 %v145
    %v433 = vpop.f32.mrb[0].mxu0
    %v434 = vadd.f32 %v354, %v433
    %v435 = vpop.f32.mrb[0].mxu0
    %v436 = vadd.f32 %v358, %v435
    %437 = vdwg.mxu0
    %v438 = vld [vmem:[#allocation9] sm:$0xff]
    %v439 = vld [vmem:[#allocation9 + $0x8] sm:$0xff]
    %v440 = vld [vmem:[#allocation9 + $0x10] sm:$0xff]
    %v441 = vld [vmem:[#allocation9 + $0x18] sm:$0xff]
    %v442 = vld [vmem:[#allocation9 + $0x20] sm:$0xff]
    %v443 = vld [vmem:[#allocation9 + $0x28] sm:$0xff]
    %v444 = vld [vmem:[#allocation9 + $0x30] sm:$0xff]
    %v445 = vld [vmem:[#allocation9 + $0x38] sm:$0xff]
    %v446 = vld [vmem:[#allocation9 + $0x40] sm:$0xff]
    %v447 = vld [vmem:[#allocation9 + $0x48] sm:$0xff]
    %v448 = vld [vmem:[#allocation9 + $0x50] sm:$0xff]
    %v449 = vld [vmem:[#allocation9 + $0x58] sm:$0xff]
    %v450 = vld [vmem:[#allocation9 + $0x60] sm:$0xff]
    %v451 = vld [vmem:[#allocation9 + $0x68] sm:$0xff]
    %v452 = vld [vmem:[#allocation9 + $0x70] sm:$0xff]
    %v453 = vld [vmem:[#allocation9 + $0x78] sm:$0xff]
    %v454 = vld [vmem:[#allocation9 + $0x80] sm:$0xff]
    %v455 = vld [vmem:[#allocation9 + $0x88] sm:$0xff]
    %v456 = vld [vmem:[#allocation9 + $0x90] sm:$0xff]
    %v457 = vld [vmem:[#allocation9 + $0x98] sm:$0xff]
    %v458 = vld [vmem:[#allocation9 + $0xa0] sm:$0xff]
    %v459 = vld [vmem:[#allocation9 + $0xa8] sm:$0xff]
    %v460 = vld [vmem:[#allocation9 + $0xb0] sm:$0xff]
    %v461 = vld [vmem:[#allocation9 + $0xb8] sm:$0xff]
    %v462 = vld [vmem:[#allocation9 + $0xc0] sm:$0xff]
    %v463 = vld [vmem:[#allocation9 + $0xc8] sm:$0xff]
    %v464 = vld [vmem:[#allocation9 + $0xd0] sm:$0xff]
    %v465 = vld [vmem:[#allocation9 + $0xd8] sm:$0xff]
    %v466 = vld [vmem:[#allocation9 + $0xe0] sm:$0xff]
    %v467 = vld [vmem:[#allocation9 + $0xe8] sm:$0xff]
    %v468 = vld [vmem:[#allocation9 + $0xf0] sm:$0xff]
    %v469 = vld [vmem:[#allocation9 + $0xf8] sm:$0xff]
    %v470 = vld [vmem:[#allocation10] sm:$0x1]
    %471 = vmatprep.subr.mxu0 0.0
    %472 = vmatpush1.xpose.msra.mxu0 %v321
    %473 = vmatprep.subr.mxu0 0.0
    %474 = vmatpush1.xpose.msra.mxu0 0.0
    %475 = vmatprep.subr.mxu0 0.0
    %476 = vmatpush1.xpose.msra.mxu0 0.0
    %477 = vmatprep.subr.mxu0 0.0
    %478 = vmatpush1.xpose.msra.mxu0 0.0
    %479 = vmatprep.subr.mxu0 0.0
    %480 = vmatpush1.xpose.msra.mxu0 0.0
    %481 = vmatprep.subr.mxu0 0.0
    %482 = vmatpush1.xpose.msra.mxu0 0.0
    %483 = vmatprep.subr.mxu0 0.0
    %484 = vmatpush1.xpose.msra.mxu0 0.0
    %485 = vmatprep.subr.mxu0 0.0
    %486 = vmatpush1.xpose.msra.mxu0 0.0
    %487 = vmatprep.subr.mxu0 0.0
    %488 = vmatpush1.xpose.msra.mxu0 0.0
    %489 = vmatprep.subr.mxu0 0.0
    %490 = vmatpush1.xpose.msra.mxu0 0.0
    %491 = vmatprep.subr.mxu0 0.0
    %492 = vmatpush1.xpose.msra.mxu0 0.0
    %493 = vmatprep.subr.mxu0 0.0
    %494 = vmatpush1.xpose.msra.mxu0 0.0
    %495 = vmatprep.subr.mxu0 0.0
    %496 = vmatpush1.xpose.msra.mxu0 0.0
    %497 = vmatprep.subr.mxu0 0.0
    %498 = vmatpush1.xpose.msra.mxu0 0.0
    %499 = vmatprep.subr.mxu0 0.0
    %500 = vmatpush1.xpose.msra.mxu0 0.0
    %501 = vmatprep.subr.mxu0 0.0
    %502 = vmatpush1.xpose.msra.mxu0 0.0
    %503 = vmatprep.subr.mxu0 0.0
    %504 = vmatpush1.xpose.msra.mxu0 0.0
    %505 = vmatprep.subr.mxu0 0.0
    %506 = vmatpush1.xpose.msra.mxu0 0.0
    %507 = vmatprep.subr.mxu0 0.0
    %508 = vmatpush1.xpose.msra.mxu0 0.0
    %509 = vmatprep.subr.mxu0 0.0
    %510 = vmatpush1.xpose.msra.mxu0 0.0
    %511 = vmatprep.subr.mxu0 0.0
    %512 = vmatpush1.xpose.msra.mxu0 0.0
    %513 = vmatprep.subr.mxu0 0.0
    %514 = vmatpush1.xpose.msra.mxu0 0.0
    %515 = vmatprep.subr.mxu0 0.0
    %516 = vmatpush1.xpose.msra.mxu0 0.0
    %517 = vmatprep.subr.mxu0 0.0
    %518 = vmatpush1.xpose.msra.mxu0 0.0
    %519 = vmatprep.subr.mxu0 0.0
    %520 = vmatpush1.xpose.msra.mxu0 0.0
    %521 = vmatprep.subr.mxu0 0.0
    %522 = vmatpush1.xpose.msra.mxu0 0.0
    %523 = vmatprep.subr.mxu0 0.0
    %524 = vmatpush1.xpose.msra.mxu0 0.0
    %525 = vmatprep.subr.mxu0 0.0
    %526 = vmatpush1.xpose.msra.mxu0 0.0
    %527 = vmatprep.subr.mxu0 0.0
    %528 = vmatpush1.xpose.msra.mxu0 0.0
    %529 = vmatprep.subr.mxu0 0.0
    %530 = vmatpush1.xpose.msra.mxu0 0.0
    %531 = vmatprep.subr.mxu0 0.0
    %532 = vmatpush1.xpose.msra.mxu0 0.0
    %533 = vmatprep.subr.mxu0 0.0
    %534 = vmatpush1.xpose.msra.mxu0 0.0
    %535 = vmatprep.mubr.f32.mxu0 0.0
    %536 = vmatmul.mubr.f32.gmra.mrb[0].mxu0 %v214
    %v537 = vpop.f32.mrb[0].mxu0
    %v538 = vadd.f32 0.0, %v537
    %v539 = vpop.f32.mrb[0].mxu0
    %540 = vdwg.mxu0
    %vm541 = vcmask 64512
    %v542 = vsel %vm541, %v538, -inf
    %543 = vmax.xlane.f32.xlu0 %v542
    %v544 = vpop.xlane.xlu0 %543
    %v545 = vsub.f32 %v538, %v544
    %v546 = vmul.f32 %v545, 1.442695
    %v547 = vpow.pop %v546
    %v548 = vsel %vm541, %v547, 0.0
    %549 = vadd.xlane.f32.xlu0 %v548
    %v550 = vpop.xlane.xlu0 %549
    %v551 = vrcp.pop %v550
    %v552 = vmul.f32 %v547, %v551
    %v554 = vsel %vm541, %v552, 0
    %556 = vmatprep.subr.mxu0 0.0
    %557 = vmatpush1.msra.mxu0 %v428
    %558 = vmatprep.subr.mxu0 0.0
    %559 = vmatpush1.msra.mxu0 0.0
    %560 = vmatprep.subr.mxu0 0.0
    %561 = vmatpush1.msra.mxu0 0.0
    %562 = vmatprep.subr.mxu0 0.0
    %563 = vmatpush1.msra.mxu0 0.0
    %564 = vmatprep.subr.mxu0 0.0
    %565 = vmatpush1.msra.mxu0 0.0
    %566 = vmatprep.subr.mxu0 0.0
    %567 = vmatpush1.msra.mxu0 0.0
    %568 = vmatprep.subr.mxu0 0.0
    %569 = vmatpush1.msra.mxu0 0.0
    %570 = vmatprep.subr.mxu0 0.0
    %571 = vmatpush1.msra.mxu0 0.0
    %572 = vmatprep.subr.mxu0 0.0
    %573 = vmatpush1.msra.mxu0 0.0
    %574 = vmatprep.subr.mxu0 0.0
    %575 = vmatpush1.msra.mxu0 0.0
    %576 = vmatprep.subr.mxu0 0.0
    %577 = vmatpush1.msra.mxu0 0.0
    %578 = vmatprep.subr.mxu0 0.0
    %579 = vmatpush1.msra.mxu0 0.0
    %580 = vmatprep.subr.mxu0 0.0
    %581 = vmatpush1.msra.mxu0 0.0
    %582 = vmatprep.subr.mxu0 0.0
    %583 = vmatpush1.msra.mxu0 0.0
    %584 = vmatprep.subr.mxu0 0.0
    %585 = vmatpush1.msra.mxu0 0.0
    %586 = vmatprep.subr.mxu0 0.0
    %587 = vmatpush1.msra.mxu0 0.0
    %588 = vmatprep.subr.mxu0 0.0
    %589 = vmatpush1.msra.mxu0 0.0
    %590 = vmatprep.subr.mxu0 0.0
    %591 = vmatpush1.msra.mxu0 0.0
    %592 = vmatprep.subr.mxu0 0.0
    %593 = vmatpush1.msra.mxu0 0.0
    %594 = vmatprep.subr.mxu0 0.0
    %595 = vmatpush1.msra.mxu0 0.0
    %596 = vmatprep.subr.mxu0 0.0
    %597 = vmatpush1.msra.mxu0 0.0
    %598 = vmatprep.subr.mxu0 0.0
    %599 = vmatpush1.msra.mxu0 0.0
    %600 = vmatprep.subr.mxu0 0.0
    %601 = vmatpush1.msra.mxu0 0.0
    %602 = vmatprep.subr.mxu0 0.0
    %603 = vmatpush1.msra.mxu0 0.0
    %604 = vmatprep.subr.mxu0 0.0
    %605 = vmatpush1.msra.mxu0 0.0
    %606 = vmatprep.subr.mxu0 0.0
    %607 = vmatpush1.msra.mxu0 0.0
    %608 = vmatprep.subr.mxu0 0.0
    %609 = vmatpush1.msra.mxu0 0.0
    %610 = vmatprep.subr.mxu0 0.0
    %611 = vmatpush1.msra.mxu0 0.0
    %612 = vmatprep.subr.mxu0 0.0
    %613 = vmatpush1.msra.mxu0 0.0
    %614 = vmatprep.subr.mxu0 0.0
    %615 = vmatpush1.msra.mxu0 0.0
    %616 = vmatprep.subr.mxu0 0.0
    %617 = vmatpush1.msra.mxu0 0.0
    %618 = vmatprep.subr.mxu0 0.0
    %619 = vmatpush1.msra.mxu0 0.0
    %620 = vmatprep.mubr.f32.mxu0 0.0
    %621 = vmatmul.mubr.f32.gmra.mrb[0].mxu0 %v554
    %v622 = vpop.f32.mrb[0].mxu0
    %v623 = vadd.f32 0.0, %v622
    %v624 = vpop.f32.mrb[0].mxu0
    %625 = vdwg.mxu0
    %626 = vmatprep.subr.mxu0 0.0
    %627 = vmatpush1.xpose.msra.mxu0 %v323
    %628 = vmatprep.subr.mxu0 0.0
    %629 = vmatpush1.xpose.msra.mxu0 0.0
    %630 = vmatprep.subr.mxu0 0.0
    %631 = vmatpush1.xpose.msra.mxu0 0.0
    %632 = vmatprep.subr.mxu0 0.0
    %633 = vmatpush1.xpose.msra.mxu0 0.0
    %634 = vmatprep.subr.mxu0 0.0
    %635 = vmatpush1.xpose.msra.mxu0 0.0
    %636 = vmatprep.subr.mxu0 0.0
    %637 = vmatpush1.xpose.msra.mxu0 0.0
    %638 = vmatprep.subr.mxu0 0.0
    %639 = vmatpush1.xpose.msra.mxu0 0.0
    %640 = vmatprep.subr.mxu0 0.0
    %641 = vmatpush1.xpose.msra.mxu0 0.0
    %642 = vmatprep.subr.mxu0 0.0
    %643 = vmatpush1.xpose.msra.mxu0 0.0
    %644 = vmatprep.subr.mxu0 0.0
    %645 = vmatpush1.xpose.msra.mxu0 0.0
    %646 = vmatprep.subr.mxu0 0.0
    %647 = vmatpush1.xpose.msra.mxu0 0.0
    %648 = vmatprep.subr.mxu0 0.0
    %649 = vmatpush1.xpose.msra.mxu0 0.0
    %650 = vmatprep.subr.mxu0 0.0
    %651 = vmatpush1.xpose.msra.mxu0 0.0
    %652 = vmatprep.subr.mxu0 0.0
    %653 = vmatpush1.xpose.msra.mxu0 0.0
    %654 = vmatprep.subr.mxu0 0.0
    %655 = vmatpush1.xpose.msra.mxu0 0.0
    %656 = vmatprep.subr.mxu0 0.0
    %657 = vmatpush1.xpose.msra.mxu0 0.0
    %658 = vmatprep.subr.mxu0 0.0
    %659 = vmatpush1.xpose.msra.mxu0 0.0
    %660 = vmatprep.subr.mxu0 0.0
    %661 = vmatpush1.xpose.msra.mxu0 0.0
    %662 = vmatprep.subr.mxu0 0.0
    %663 = vmatpush1.xpose.msra.mxu0 0.0
    %664 = vmatprep.subr.mxu0 0.0
    %665 = vmatpush1.xpose.msra.mxu0 0.0
    %666 = vmatprep.subr.mxu0 0.0
    %667 = vmatpush1.xpose.msra.mxu0 0.0
    %668 = vmatprep.subr.mxu0 0.0
    %669 = vmatpush1.xpose.msra.mxu0 0.0
    %670 = vmatprep.subr.mxu0 0.0
    %671 = vmatpush1.xpose.msra.mxu0 0.0
    %672 = vmatprep.subr.mxu0 0.0
    %673 = vmatpush1.xpose.msra.mxu0 0.0
    %674 = vmatprep.subr.mxu0 0.0
    %675 = vmatpush1.xpose.msra.mxu0 0.0
    %676 = vmatprep.subr.mxu0 0.0
    %677 = vmatpush1.xpose.msra.mxu0 0.0
    %678 = vmatprep.subr.mxu0 0.0
    %679 = vmatpush1.xpose.msra.mxu0 0.0
    %680 = vmatprep.subr.mxu0 0.0
    %681 = vmatpush1.xpose.msra.mxu0 0.0
    %682 = vmatprep.subr.mxu0 0.0
    %683 = vmatpush1.xpose.msra.mxu0 0.0
    %684 = vmatprep.subr.mxu0 0.0
    %685 = vmatpush1.xpose.msra.mxu0 0.0
    %686 = vmatprep.subr.mxu0 0.0
    %687 = vmatpush1.xpose.msra.mxu0 0.0
    %688 = vmatprep.subr.mxu0 0.0
    %689 = vmatpush1.xpose.msra.mxu0 0.0
    %690 = vmatprep.mubr.f32.mxu0 0.0
    %691 = vmatmul.mubr.f32.gmra.mrb[0].mxu0 %v216
    %v692 = vpop.f32.mrb[0].mxu0
    %v693 = vadd.f32 0.0, %v692
    %v694 = vpop.f32.mrb[0].mxu0
    %695 = vdwg.mxu0
    %v696 = vsel %vm541, %v693, -inf
    %697 = vmax.xlane.f32.xlu0 %v696
    %v698 = vpop.xlane.xlu0 %697
    %v699 = vsub.f32 %v693, %v698
    %v700 = vmul.f32 %v699, 1.442695
    %v701 = vpow.pop %v700
    %v702 = vsel %vm541, %v701, 0.0
    %703 = vadd.xlane.f32.xlu0 %v702
    %v704 = vpop.xlane.xlu0 %703
    %v705 = vrcp.pop %v704
    %v706 = vmul.f32 %v701, %v705
    %v708 = vsel %vm541, %v706, 0
    %710 = vmatprep.subr.mxu0 0.0
    %711 = vmatpush1.msra.mxu0 %v430
    %712 = vmatprep.subr.mxu0 0.0
    %713 = vmatpush1.msra.mxu0 0.0
    %714 = vmatprep.subr.mxu0 0.0
    %715 = vmatpush1.msra.mxu0 0.0
    %716 = vmatprep.subr.mxu0 0.0
    %717 = vmatpush1.msra.mxu0 0.0
    %718 = vmatprep.subr.mxu0 0.0
    %719 = vmatpush1.msra.mxu0 0.0
    %720 = vmatprep.subr.mxu0 0.0
    %721 = vmatpush1.msra.mxu0 0.0
    %722 = vmatprep.subr.mxu0 0.0
    %723 = vmatpush1.msra.mxu0 0.0
    %724 = vmatprep.subr.mxu0 0.0
    %725 = vmatpush1.msra.mxu0 0.0
    %726 = vmatprep.subr.mxu0 0.0
    %727 = vmatpush1.msra.mxu0 0.0
    %728 = vmatprep.subr.mxu0 0.0
    %729 = vmatpush1.msra.mxu0 0.0
    %730 = vmatprep.subr.mxu0 0.0
    %731 = vmatpush1.msra.mxu0 0.0
    %732 = vmatprep.subr.mxu0 0.0
    %733 = vmatpush1.msra.mxu0 0.0
    %734 = vmatprep.subr.mxu0 0.0
    %735 = vmatpush1.msra.mxu0 0.0
    %736 = vmatprep.subr.mxu0 0.0
    %737 = vmatpush1.msra.mxu0 0.0
    %738 = vmatprep.subr.mxu0 0.0
    %739 = vmatpush1.msra.mxu0 0.0
    %740 = vmatprep.subr.mxu0 0.0
    %741 = vmatpush1.msra.mxu0 0.0
    %742 = vmatprep.subr.mxu0 0.0
    %743 = vmatpush1.msra.mxu0 0.0
    %744 = vmatprep.subr.mxu0 0.0
    %745 = vmatpush1.msra.mxu0 0.0
    %746 = vmatprep.subr.mxu0 0.0
    %747 = vmatpush1.msra.mxu0 0.0
    %748 = vmatprep.subr.mxu0 0.0
    %749 = vmatpush1.msra.mxu0 0.0
    %750 = vmatprep.subr.mxu0 0.0
    %751 = vmatpush1.msra.mxu0 0.0
    %752 = vmatprep.subr.mxu0 0.0
    %753 = vmatpush1.msra.mxu0 0.0
    %754 = vmatprep.subr.mxu0 0.0
    %755 = vmatpush1.msra.mxu0 0.0
    %756 = vmatprep.subr.mxu0 0.0
    %757 = vmatpush1.msra.mxu0 0.0
    %758 = vmatprep.subr.mxu0 0.0
    %759 = vmatpush1.msra.mxu0 0.0
    %760 = vmatprep.subr.mxu0 0.0
    %761 = vmatpush1.msra.mxu0 0.0
    %762 = vmatprep.subr.mxu0 0.0
    %763 = vmatpush1.msra.mxu0 0.0
    %764 = vmatprep.subr.mxu0 0.0
    %765 = vmatpush1.msra.mxu0 0.0
    %766 = vmatprep.subr.mxu0 0.0
    %767 = vmatpush1.msra.mxu0 0.0
    %768 = vmatprep.subr.mxu0 0.0
    %769 = vmatpush1.msra.mxu0 0.0
    %770 = vmatprep.subr.mxu0 0.0
    %771 = vmatpush1.msra.mxu0 0.0
    %772 = vmatprep.subr.mxu0 0.0
    %773 = vmatpush1.msra.mxu0 0.0
    %774 = vmatprep.mubr.f32.mxu0 0.0
    %775 = vmatmul.mubr.f32.gmra.mrb[0].mxu0 %v708
    %v776 = vpop.f32.mrb[0].mxu0
    %v777 = vadd.f32 0.0, %v776
    %v778 = vpop.f32.mrb[0].mxu0
    %779 = vdwg.mxu0
    %780 = vmatprep.subr.mxu0 0.0
    %781 = vmatpush1.msra.mxu0 %v454
    %782 = vmatprep.subr.mxu0 0.0
    %783 = vmatpush1.msra.mxu0 %v455
    %784 = vmatprep.subr.mxu0 0.0
    %785 = vmatpush1.msra.mxu0 %v456
    %786 = vmatprep.subr.mxu0 0.0
    %787 = vmatpush1.msra.mxu0 %v457
    %788 = vmatprep.subr.mxu0 0.0
    %789 = vmatpush1.msra.mxu0 %v458
    %790 = vmatprep.subr.mxu0 0.0
    %791 = vmatpush1.msra.mxu0 %v459
    %792 = vmatprep.subr.mxu0 0.0
    %793 = vmatpush1.msra.mxu0 %v460
    %794 = vmatprep.subr.mxu0 0.0
    %795 = vmatpush1.msra.mxu0 %v461
    %796 = vmatprep.subr.mxu0 0.0
    %797 = vmatpush1.msra.mxu0 %v462
    %798 = vmatprep.subr.mxu0 0.0
    %799 = vmatpush1.msra.mxu0 %v463
    %800 = vmatprep.subr.mxu0 0.0
    %801 = vmatpush1.msra.mxu0 %v464
    %802 = vmatprep.subr.mxu0 0.0
    %803 = vmatpush1.msra.mxu0 %v465
    %804 = vmatprep.subr.mxu0 0.0
    %805 = vmatpush1.msra.mxu0 %v466
    %806 = vmatprep.subr.mxu0 0.0
    %807 = vmatpush1.msra.mxu0 %v467
    %808 = vmatprep.subr.mxu0 0.0
    %809 = vmatpush1.msra.mxu0 %v468
    %810 = vmatprep.subr.mxu0 0.0
    %811 = vmatpush1.msra.mxu0 %v469
    %812 = vmatprep.subr.mxu0 0.0
    %813 = vmatpush1.msra.mxu0 0.0
    %814 = vmatprep.subr.mxu0 0.0
    %815 = vmatpush1.msra.mxu0 0.0
    %816 = vmatprep.subr.mxu0 0.0
    %817 = vmatpush1.msra.mxu0 0.0
    %818 = vmatprep.subr.mxu0 0.0
    %819 = vmatpush1.msra.mxu0 0.0
    %820 = vmatprep.subr.mxu0 0.0
    %821 = vmatpush1.msra.mxu0 0.0
    %822 = vmatprep.subr.mxu0 0.0
    %823 = vmatpush1.msra.mxu0 0.0
    %824 = vmatprep.subr.mxu0 0.0
    %825 = vmatpush1.msra.mxu0 0.0
    %826 = vmatprep.subr.mxu0 0.0
    %827 = vmatpush1.msra.mxu0 0.0
    %828 = vmatprep.subr.mxu0 0.0
    %829 = vmatpush1.msra.mxu0 0.0
    %830 = vmatprep.subr.mxu0 0.0
    %831 = vmatpush1.msra.mxu0 0.0
    %832 = vmatprep.subr.mxu0 0.0
    %833 = vmatpush1.msra.mxu0 0.0
    %834 = vmatprep.subr.mxu0 0.0
    %835 = vmatpush1.msra.mxu0 0.0
    %836 = vmatprep.subr.mxu0 0.0
    %837 = vmatpush1.msra.mxu0 0.0
    %838 = vmatprep.subr.mxu0 0.0
    %839 = vmatpush1.msra.mxu0 0.0
    %840 = vmatprep.subr.mxu0 0.0
    %841 = vmatpush1.msra.mxu0 0.0
    %842 = vmatprep.subr.mxu0 0.0
    %843 = vmatpush1.msra.mxu0 0.0
    %844 = vmatprep.mubr.f32.mxu0 0.0
    %845 = vmatmul.mubr.f32.gmra.mrb[0].mxu0 %v777
    %v846 = vpop.f32.mrb[0].mxu0
    %v847 = vadd.f32 0.0, %v846
    %v848 = vpop.f32.mrb[0].mxu0
    %849 = vdwg.mxu0
    %850 = vmatprep.subr.mxu0 0.0
    %851 = vmatpush1.msra.mxu0 %v438
    %852 = vmatprep.subr.mxu0 0.0
    %853 = vmatpush1.msra.mxu0 %v439
    %854 = vmatprep.subr.mxu0 0.0
    %855 = vmatpush1.msra.mxu0 %v440
    %856 = vmatprep.subr.mxu0 0.0
    %857 = vmatpush1.msra.mxu0 %v441
    %858 = vmatprep.subr.mxu0 0.0
    %859 = vmatpush1.msra.mxu0 %v442
    %860 = vmatprep.subr.mxu0 0.0
    %861 = vmatpush1.msra.mxu0 %v443
    %862 = vmatprep.subr.mxu0 0.0
    %863 = vmatpush1.msra.mxu0 %v444
    %864 = vmatprep.subr.mxu0 0.0
    %865 = vmatpush1.msra.mxu0 %v445
    %866 = vmatprep.subr.mxu0 0.0
    %867 = vmatpush1.msra.mxu0 %v446
    %868 = vmatprep.subr.mxu0 0.0
    %869 = vmatpush1.msra.mxu0 %v447
    %870 = vmatprep.subr.mxu0 0.0
    %871 = vmatpush1.msra.mxu0 %v448
    %872 = vmatprep.subr.mxu0 0.0
    %873 = vmatpush1.msra.mxu0 %v449
    %874 = vmatprep.subr.mxu0 0.0
    %875 = vmatpush1.msra.mxu0 %v450
    %876 = vmatprep.subr.mxu0 0.0
    %877 = vmatpush1.msra.mxu0 %v451
    %878 = vmatprep.subr.mxu0 0.0
    %879 = vmatpush1.msra.mxu0 %v452
    %880 = vmatprep.subr.mxu0 0.0
    %881 = vmatpush1.msra.mxu0 %v453
    %882 = vmatprep.subr.mxu0 0.0
    %883 = vmatpush1.msra.mxu0 0.0
    %884 = vmatprep.subr.mxu0 0.0
    %885 = vmatpush1.msra.mxu0 0.0
    %886 = vmatprep.subr.mxu0 0.0
    %887 = vmatpush1.msra.mxu0 0.0
    %888 = vmatprep.subr.mxu0 0.0
    %889 = vmatpush1.msra.mxu0 0.0
    %890 = vmatprep.subr.mxu0 0.0
    %891 = vmatpush1.msra.mxu0 0.0
    %892 = vmatprep.subr.mxu0 0.0
    %893 = vmatpush1.msra.mxu0 0.0
    %894 = vmatprep.subr.mxu0 0.0
    %895 = vmatpush1.msra.mxu0 0.0
    %896 = vmatprep.subr.mxu0 0.0
    %897 = vmatpush1.msra.mxu0 0.0
    %898 = vmatprep.subr.mxu0 0.0
    %899 = vmatpush1.msra.mxu0 0.0
    %900 = vmatprep.subr.mxu0 0.0
    %901 = vmatpush1.msra.mxu0 0.0
    %902 = vmatprep.subr.mxu0 0.0
    %903 = vmatpush1.msra.mxu0 0.0
    %904 = vmatprep.subr.mxu0 0.0
    %905 = vmatpush1.msra.mxu0 0.0
    %906 = vmatprep.subr.mxu0 0.0
    %907 = vmatpush1.msra.mxu0 0.0
    %908 = vmatprep.subr.mxu0 0.0
    %909 = vmatpush1.msra.mxu0 0.0
    %910 = vmatprep.subr.mxu0 0.0
    %911 = vmatpush1.msra.mxu0 0.0
    %912 = vmatprep.subr.mxu0 0.0
    %913 = vmatpush1.msra.mxu0 0.0
    %914 = vmatprep.mubr.f32.mxu0 0.0
    %915 = vmatmul.mubr.f32.gmra.mrb[0].mxu0 %v623
    %v916 = vpop.f32.mrb[0].mxu0
    %v917 = vadd.f32 %v847, %v916
    %v918 = vpop.f32.mrb[0].mxu0
    %919 = vdwg.mxu0
    %v921 = vlaneseq
    %v922 = vshrl.u32 %v921, 7
    %v923 = vsub.s32 0, %v922
    %v924 = vrot.slane %v470, %v923
    %v926 = vadd.f32 %v917, %v924
    %927 = vst [vmem:[%s9] sm:$0xff] %v926
    %928 = vmatprep.subr.mxu0 0.0
    %929 = vmatpush1.xpose.msra.mxu0 %v327
    %930 = vmatprep.subr.mxu0 0.0
    %931 = vmatpush1.xpose.msra.mxu0 0.0
    %932 = vmatprep.subr.mxu0 0.0
    %933 = vmatpush1.xpose.msra.mxu0 0.0
    %934 = vmatprep.subr.mxu0 0.0
    %935 = vmatpush1.xpose.msra.mxu0 0.0
    %936 = vmatprep.subr.mxu0 0.0
    %937 = vmatpush1.xpose.msra.mxu0 0.0
    %938 = vmatprep.subr.mxu0 0.0
    %939 = vmatpush1.xpose.msra.mxu0 0.0
    %940 = vmatprep.subr.mxu0 0.0
    %941 = vmatpush1.xpose.msra.mxu0 0.0
    %942 = vmatprep.subr.mxu0 0.0
    %943 = vmatpush1.xpose.msra.mxu0 0.0
    %944 = vmatprep.subr.mxu0 0.0
    %945 = vmatpush1.xpose.msra.mxu0 0.0
    %946 = vmatprep.subr.mxu0 0.0
    %947 = vmatpush1.xpose.msra.mxu0 0.0
    %948 = vmatprep.subr.mxu0 0.0
    %949 = vmatpush1.xpose.msra.mxu0 0.0
    %950 = vmatprep.subr.mxu0 0.0
    %951 = vmatpush1.xpose.msra.mxu0 0.0
    %952 = vmatprep.subr.mxu0 0.0
    %953 = vmatpush1.xpose.msra.mxu0 0.0
    %954 = vmatprep.subr.mxu0 0.0
    %955 = vmatpush1.xpose.msra.mxu0 0.0
    %956 = vmatprep.subr.mxu0 0.0
    %957 = vmatpush1.xpose.msra.mxu0 0.0
    %958 = vmatprep.subr.mxu0 0.0
    %959 = vmatpush1.xpose.msra.mxu0 0.0
    %960 = vmatprep.subr.mxu0 0.0
    %961 = vmatpush1.xpose.msra.mxu0 0.0
    %962 = vmatprep.subr.mxu0 0.0
    %963 = vmatpush1.xpose.msra.mxu0 0.0
    %964 = vmatprep.subr.mxu0 0.0
    %965 = vmatpush1.xpose.msra.mxu0 0.0
    %966 = vmatprep.subr.mxu0 0.0
    %967 = vmatpush1.xpose.msra.mxu0 0.0
    %968 = vmatprep.subr.mxu0 0.0
    %969 = vmatpush1.xpose.msra.mxu0 0.0
    %970 = vmatprep.subr.mxu0 0.0
    %971 = vmatpush1.xpose.msra.mxu0 0.0
    %972 = vmatprep.subr.mxu0 0.0
    %973 = vmatpush1.xpose.msra.mxu0 0.0
    %974 = vmatprep.subr.mxu0 0.0
    %975 = vmatpush1.xpose.msra.mxu0 0.0
    %976 = vmatprep.subr.mxu0 0.0
    %977 = vmatpush1.xpose.msra.mxu0 0.0
    %978 = vmatprep.subr.mxu0 0.0
    %979 = vmatpush1.xpose.msra.mxu0 0.0
    %980 = vmatprep.subr.mxu0 0.0
    %981 = vmatpush1.xpose.msra.mxu0 0.0
    %982 = vmatprep.subr.mxu0 0.0
    %983 = vmatpush1.xpose.msra.mxu0 0.0
    %984 = vmatprep.subr.mxu0 0.0
    %985 = vmatpush1.xpose.msra.mxu0 0.0
    %986 = vmatprep.subr.mxu0 0.0
    %987 = vmatpush1.xpose.msra.mxu0 0.0
    %988 = vmatprep.subr.mxu0 0.0
    %989 = vmatpush1.xpose.msra.mxu0 0.0
    %990 = vmatprep.subr.mxu0 0.0
    %991 = vmatpush1.xpose.msra.mxu0 0.0
    %992 = vmatprep.mubr.f32.mxu0 0.0
    %993 = vmatmul.mubr.f32.gmra.mrb[0].mxu0 %v220
    %v994 = vpop.f32.mrb[0].mxu0
    %v995 = vadd.f32 0.0, %v994
    %v996 = vpop.f32.mrb[0].mxu0
    %997 = vdwg.mxu0
    %v998 = vsel %vm541, %v995, -inf
    %999 = vmax.xlane.f32.xlu0 %v998
    %v1000 = vpop.xlane.xlu0 %999
    %v1001 = vsub.f32 %v995, %v1000
    %v1002 = vmul.f32 %v1001, 1.442695
    %v1003 = vpow.pop %v1002
    %v1004 = vsel %vm541, %v1003, 0.0
    %1005 = vadd.xlane.f32.xlu0 %v1004
    %v1006 = vpop.xlane.xlu0 %1005
    %v1007 = vrcp.pop %v1006
    %v1008 = vmul.f32 %v1003, %v1007
    %v1010 = vsel %vm541, %v1008, 0
    %1012 = vmatprep.subr.mxu0 0.0
    %1013 = vmatpush1.msra.mxu0 %v434
    %1014 = vmatprep.subr.mxu0 0.0
    %1015 = vmatpush1.msra.mxu0 0.0
    %1016 = vmatprep.subr.mxu0 0.0
    %1017 = vmatpush1.msra.mxu0 0.0
    %1018 = vmatprep.subr.mxu0 0.0
    %1019 = vmatpush1.msra.mxu0 0.0
    %1020 = vmatprep.subr.mxu0 0.0
    %1021 = vmatpush1.msra.mxu0 0.0
    %1022 = vmatprep.subr.mxu0 0.0
    %1023 = vmatpush1.msra.mxu0 0.0
    %1024 = vmatprep.subr.mxu0 0.0
    %1025 = vmatpush1.msra.mxu0 0.0
    %1026 = vmatprep.subr.mxu0 0.0
    %1027 = vmatpush1.msra.mxu0 0.0
    %1028 = vmatprep.subr.mxu0 0.0
    %1029 = vmatpush1.msra.mxu0 0.0
    %1030 = vmatprep.subr.mxu0 0.0
    %1031 = vmatpush1.msra.mxu0 0.0
    %1032 = vmatprep.subr.mxu0 0.0
    %1033 = vmatpush1.msra.mxu0 0.0
    %1034 = vmatprep.subr.mxu0 0.0
    %1035 = vmatpush1.msra.mxu0 0.0
    %1036 = vmatprep.subr.mxu0 0.0
    %1037 = vmatpush1.msra.mxu0 0.0
    %1038 = vmatprep.subr.mxu0 0.0
    %1039 = vmatpush1.msra.mxu0 0.0
    %1040 = vmatprep.subr.mxu0 0.0
    %1041 = vmatpush1.msra.mxu0 0.0
    %1042 = vmatprep.subr.mxu0 0.0
    %1043 = vmatpush1.msra.mxu0 0.0
    %1044 = vmatprep.subr.mxu0 0.0
    %1045 = vmatpush1.msra.mxu0 0.0
    %1046 = vmatprep.subr.mxu0 0.0
    %1047 = vmatpush1.msra.mxu0 0.0
    %1048 = vmatprep.subr.mxu0 0.0
    %1049 = vmatpush1.msra.mxu0 0.0
    %1050 = vmatprep.subr.mxu0 0.0
    %1051 = vmatpush1.msra.mxu0 0.0
    %1052 = vmatprep.subr.mxu0 0.0
    %1053 = vmatpush1.msra.mxu0 0.0
    %1054 = vmatprep.subr.mxu0 0.0
    %1055 = vmatpush1.msra.mxu0 0.0
    %1056 = vmatprep.subr.mxu0 0.0
    %1057 = vmatpush1.msra.mxu0 0.0
    %1058 = vmatprep.subr.mxu0 0.0
    %1059 = vmatpush1.msra.mxu0 0.0
    %1060 = vmatprep.subr.mxu0 0.0
    %1061 = vmatpush1.msra.mxu0 0.0
    %1062 = vmatprep.subr.mxu0 0.0
    %1063 = vmatpush1.msra.mxu0 0.0
    %1064 = vmatprep.subr.mxu0 0.0
    %1065 = vmatpush1.msra.mxu0 0.0
    %1066 = vmatprep.subr.mxu0 0.0
    %1067 = vmatpush1.msra.mxu0 0.0
    %1068 = vmatprep.subr.mxu0 0.0
    %1069 = vmatpush1.msra.mxu0 0.0
    %1070 = vmatprep.subr.mxu0 0.0
    %1071 = vmatpush1.msra.mxu0 0.0
    %1072 = vmatprep.subr.mxu0 0.0
    %1073 = vmatpush1.msra.mxu0 0.0
    %1074 = vmatprep.subr.mxu0 0.0
    %1075 = vmatpush1.msra.mxu0 0.0
    %1076 = vmatprep.mubr.f32.mxu0 0.0
    %1077 = vmatmul.mubr.f32.gmra.mrb[0].mxu0 %v1010
    %v1078 = vpop.f32.mrb[0].mxu0
    %v1079 = vadd.f32 0.0, %v1078
    %v1080 = vpop.f32.mrb[0].mxu0
    %1081 = vdwg.mxu0
    %1082 = vmatprep.subr.mxu0 0.0
    %1083 = vmatpush1.xpose.msra.mxu0 %v329
    %1084 = vmatprep.subr.mxu0 0.0
    %1085 = vmatpush1.xpose.msra.mxu0 0.0
    %1086 = vmatprep.subr.mxu0 0.0
    %1087 = vmatpush1.xpose.msra.mxu0 0.0
    %1088 = vmatprep.subr.mxu0 0.0
    %1089 = vmatpush1.xpose.msra.mxu0 0.0
    %1090 = vmatprep.subr.mxu0 0.0
    %1091 = vmatpush1.xpose.msra.mxu0 0.0
    %1092 = vmatprep.subr.mxu0 0.0
    %1093 = vmatpush1.xpose.msra.mxu0 0.0
    %1094 = vmatprep.subr.mxu0 0.0
    %1095 = vmatpush1.xpose.msra.mxu0 0.0
    %1096 = vmatprep.subr.mxu0 0.0
    %1097 = vmatpush1.xpose.msra.mxu0 0.0
    %1098 = vmatprep.subr.mxu0 0.0
    %1099 = vmatpush1.xpose.msra.mxu0 0.0
    %1100 = vmatprep.subr.mxu0 0.0
    %1101 = vmatpush1.xpose.msra.mxu0 0.0
    %1102 = vmatprep.subr.mxu0 0.0
    %1103 = vmatpush1.xpose.msra.mxu0 0.0
    %1104 = vmatprep.subr.mxu0 0.0
    %1105 = vmatpush1.xpose.msra.mxu0 0.0
    %1106 = vmatprep.subr.mxu0 0.0
    %1107 = vmatpush1.xpose.msra.mxu0 0.0
    %1108 = vmatprep.subr.mxu0 0.0
    %1109 = vmatpush1.xpose.msra.mxu0 0.0
    %1110 = vmatprep.subr.mxu0 0.0
    %1111 = vmatpush1.xpose.msra.mxu0 0.0
    %1112 = vmatprep.subr.mxu0 0.0
    %1113 = vmatpush1.xpose.msra.mxu0 0.0
    %1114 = vmatprep.subr.mxu0 0.0
    %1115 = vmatpush1.xpose.msra.mxu0 0.0
    %1116 = vmatprep.subr.mxu0 0.0
    %1117 = vmatpush1.xpose.msra.mxu0 0.0
    %1118 = vmatprep.subr.mxu0 0.0
    %1119 = vmatpush1.xpose.msra.mxu0 0.0
    %1120 = vmatprep.subr.mxu0 0.0
    %1121 = vmatpush1.xpose.msra.mxu0 0.0
    %1122 = vmatprep.subr.mxu0 0.0
    %1123 = vmatpush1.xpose.msra.mxu0 0.0
    %1124 = vmatprep.subr.mxu0 0.0
    %1125 = vmatpush1.xpose.msra.mxu0 0.0
    %1126 = vmatprep.subr.mxu0 0.0
    %1127 = vmatpush1.xpose.msra.mxu0 0.0
    %1128 = vmatprep.subr.mxu0 0.0
    %1129 = vmatpush1.xpose.msra.mxu0 0.0
    %1130 = vmatprep.subr.mxu0 0.0
    %1131 = vmatpush1.xpose.msra.mxu0 0.0
    %1132 = vmatprep.subr.mxu0 0.0
    %1133 = vmatpush1.xpose.msra.mxu0 0.0
    %1134 = vmatprep.subr.mxu0 0.0
    %1135 = vmatpush1.xpose.msra.mxu0 0.0
    %1136 = vmatprep.subr.mxu0 0.0
    %1137 = vmatpush1.xpose.msra.mxu0 0.0
    %1138 = vmatprep.subr.mxu0 0.0
    %1139 = vmatpush1.xpose.msra.mxu0 0.0
    %1140 = vmatprep.subr.mxu0 0.0
    %1141 = vmatpush1.xpose.msra.mxu0 0.0
    %1142 = vmatprep.subr.mxu0 0.0
    %1143 = vmatpush1.xpose.msra.mxu0 0.0
    %1144 = vmatprep.subr.mxu0 0.0
    %1145 = vmatpush1.xpose.msra.mxu0 0.0
    %1146 = vmatprep.mubr.f32.mxu0 0.0
    %1147 = vmatmul.mubr.f32.gmra.mrb[0].mxu0 %v222
    %v1148 = vpop.f32.mrb[0].mxu0
    %v1149 = vadd.f32 0.0, %v1148
    %v1150 = vpop.f32.mrb[0].mxu0
    %1151 = vdwg.mxu0
    %v1152 = vsel %vm541, %v1149, -inf
    %1153 = vmax.xlane.f32.xlu0 %v1152
    %v1154 = vpop.xlane.xlu0 %1153
    %v1155 = vsub.f32 %v1149, %v1154
    %v1156 = vmul.f32 %v1155, 1.442695
    %v1157 = vpow.pop %v1156
    %v1158 = vsel %vm541, %v1157, 0.0
    %1159 = vadd.xlane.f32.xlu0 %v1158
    %v1160 = vpop.xlane.xlu0 %1159
    %v1161 = vrcp.pop %v1160
    %v1162 = vmul.f32 %v1157, %v1161
    %v1164 = vsel %vm541, %v1162, 0
    %1166 = vmatprep.subr.mxu0 0.0
    %1167 = vmatpush1.msra.mxu0 %v436
    %1168 = vmatprep.subr.mxu0 0.0
    %1169 = vmatpush1.msra.mxu0 0.0
    %1170 = vmatprep.subr.mxu0 0.0
    %1171 = vmatpush1.msra.mxu0 0.0
    %1172 = vmatprep.subr.mxu0 0.0
    %1173 = vmatpush1.msra.mxu0 0.0
    %1174 = vmatprep.subr.mxu0 0.0
    %1175 = vmatpush1.msra.mxu0 0.0
    %1176 = vmatprep.subr.mxu0 0.0
    %1177 = vmatpush1.msra.mxu0 0.0
    %1178 = vmatprep.subr.mxu0 0.0
    %1179 = vmatpush1.msra.mxu0 0.0
    %1180 = vmatprep.subr.mxu0 0.0
    %1181 = vmatpush1.msra.mxu0 0.0
    %1182 = vmatprep.subr.mxu0 0.0
    %1183 = vmatpush1.msra.mxu0 0.0
    %1184 = vmatprep.subr.mxu0 0.0
    %1185 = vmatpush1.msra.mxu0 0.0
    %1186 = vmatprep.subr.mxu0 0.0
    %1187 = vmatpush1.msra.mxu0 0.0
    %1188 = vmatprep.subr.mxu0 0.0
    %1189 = vmatpush1.msra.mxu0 0.0
    %1190 = vmatprep.subr.mxu0 0.0
    %1191 = vmatpush1.msra.mxu0 0.0
    %1192 = vmatprep.subr.mxu0 0.0
    %1193 = vmatpush1.msra.mxu0 0.0
    %1194 = vmatprep.subr.mxu0 0.0
    %1195 = vmatpush1.msra.mxu0 0.0
    %1196 = vmatprep.subr.mxu0 0.0
    %1197 = vmatpush1.msra.mxu0 0.0
    %1198 = vmatprep.subr.mxu0 0.0
    %1199 = vmatpush1.msra.mxu0 0.0
    %1200 = vmatprep.subr.mxu0 0.0
    %1201 = vmatpush1.msra.mxu0 0.0
    %1202 = vmatprep.subr.mxu0 0.0
    %1203 = vmatpush1.msra.mxu0 0.0
    %1204 = vmatprep.subr.mxu0 0.0
    %1205 = vmatpush1.msra.mxu0 0.0
    %1206 = vmatprep.subr.mxu0 0.0
    %1207 = vmatpush1.msra.mxu0 0.0
    %1208 = vmatprep.subr.mxu0 0.0
    %1209 = vmatpush1.msra.mxu0 0.0
    %1210 = vmatprep.subr.mxu0 0.0
    %1211 = vmatpush1.msra.mxu0 0.0
    %1212 = vmatprep.subr.mxu0 0.0
    %1213 = vmatpush1.msra.mxu0 0.0
    %1214 = vmatprep.subr.mxu0 0.0
    %1215 = vmatpush1.msra.mxu0 0.0
    %1216 = vmatprep.subr.mxu0 0.0
    %1217 = vmatpush1.msra.mxu0 0.0
    %1218 = vmatprep.subr.mxu0 0.0
    %1219 = vmatpush1.msra.mxu0 0.0
    %1220 = vmatprep.subr.mxu0 0.0
    %1221 = vmatpush1.msra.mxu0 0.0
    %1222 = vmatprep.subr.mxu0 0.0
    %1223 = vmatpush1.msra.mxu0 0.0
    %1224 = vmatprep.subr.mxu0 0.0
    %1225 = vmatpush1.msra.mxu0 0.0
    %1226 = vmatprep.subr.mxu0 0.0
    %1227 = vmatpush1.msra.mxu0 0.0
    %1228 = vmatprep.subr.mxu0 0.0
    %1229 = vmatpush1.msra.mxu0 0.0
    %1230 = vmatprep.mubr.f32.mxu0 0.0
    %1231 = vmatmul.mubr.f32.gmra.mrb[0].mxu0 %v1164
    %v1232 = vpop.f32.mrb[0].mxu0
    %v1233 = vadd.f32 0.0, %v1232
    %v1234 = vpop.f32.mrb[0].mxu0
    %1235 = vdwg.mxu0
    %1236 = vmatprep.subr.mxu0 0.0
    %1237 = vmatpush1.msra.mxu0 %v454
    %1238 = vmatprep.subr.mxu0 0.0
    %1239 = vmatpush1.msra.mxu0 %v455
    %1240 = vmatprep.subr.mxu0 0.0
    %1241 = vmatpush1.msra.mxu0 %v456
    %1242 = vmatprep.subr.mxu0 0.0
    %1243 = vmatpush1.msra.mxu0 %v457
    %1244 = vmatprep.subr.mxu0 0.0
    %1245 = vmatpush1.msra.mxu0 %v458
    %1246 = vmatprep.subr.mxu0 0.0
    %1247 = vmatpush1.msra.mxu0 %v459
    %1248 = vmatprep.subr.mxu0 0.0
    %1249 = vmatpush1.msra.mxu0 %v460
    %1250 = vmatprep.subr.mxu0 0.0
    %1251 = vmatpush1.msra.mxu0 %v461
    %1252 = vmatprep.subr.mxu0 0.0
    %1253 = vmatpush1.msra.mxu0 %v462
    %1254 = vmatprep.subr.mxu0 0.0
    %1255 = vmatpush1.msra.mxu0 %v463
    %1256 = vmatprep.subr.mxu0 0.0
    %1257 = vmatpush1.msra.mxu0 %v464
    %1258 = vmatprep.subr.mxu0 0.0
    %1259 = vmatpush1.msra.mxu0 %v465
    %1260 = vmatprep.subr.mxu0 0.0
    %1261 = vmatpush1.msra.mxu0 %v466
    %1262 = vmatprep.subr.mxu0 0.0
    %1263 = vmatpush1.msra.mxu0 %v467
    %1264 = vmatprep.subr.mxu0 0.0
    %1265 = vmatpush1.msra.mxu0 %v468
    %1266 = vmatprep.subr.mxu0 0.0
    %1267 = vmatpush1.msra.mxu0 %v469
    %1268 = vmatprep.subr.mxu0 0.0
    %1269 = vmatpush1.msra.mxu0 0.0
    %1270 = vmatprep.subr.mxu0 0.0
    %1271 = vmatpush1.msra.mxu0 0.0
    %1272 = vmatprep.subr.mxu0 0.0
    %1273 = vmatpush1.msra.mxu0 0.0
    %1274 = vmatprep.subr.mxu0 0.0
    %1275 = vmatpush1.msra.mxu0 0.0
    %1276 = vmatprep.subr.mxu0 0.0
    %1277 = vmatpush1.msra.mxu0 0.0
    %1278 = vmatprep.subr.mxu0 0.0
    %1279 = vmatpush1.msra.mxu0 0.0
    %1280 = vmatprep.subr.mxu0 0.0
    %1281 = vmatpush1.msra.mxu0 0.0
    %1282 = vmatprep.subr.mxu0 0.0
    %1283 = vmatpush1.msra.mxu0 0.0
    %1284 = vmatprep.subr.mxu0 0.0
    %1285 = vmatpush1.msra.mxu0 0.0
    %1286 = vmatprep.subr.mxu0 0.0
    %1287 = vmatpush1.msra.mxu0 0.0
    %1288 = vmatprep.subr.mxu0 0.0
    %1289 = vmatpush1.msra.mxu0 0.0
    %1290 = vmatprep.subr.mxu0 0.0
    %1291 = vmatpush1.msra.mxu0 0.0
    %1292 = vmatprep.subr.mxu0 0.0
    %1293 = vmatpush1.msra.mxu0 0.0
    %1294 = vmatprep.subr.mxu0 0.0
    %1295 = vmatpush1.msra.mxu0 0.0
    %1296 = vmatprep.subr.mxu0 0.0
    %1297 = vmatpush1.msra.mxu0 0.0
    %1298 = vmatprep.subr.mxu0 0.0
    %1299 = vmatpush1.msra.mxu0 0.0
    %1300 = vmatprep.mubr.f32.mxu0 0.0
    %1301 = vmatmul.mubr.f32.gmra.mrb[0].mxu0 %v1233
    %v1302 = vpop.f32.mrb[0].mxu0
    %v1303 = vadd.f32 0.0, %v1302
    %v1304 = vpop.f32.mrb[0].mxu0
    %1305 = vdwg.mxu0
    %1306 = vmatprep.subr.mxu0 0.0
    %1307 = vmatpush1.msra.mxu0 %v438
    %1308 = vmatprep.subr.mxu0 0.0
    %1309 = vmatpush1.msra.mxu0 %v439
    %1310 = vmatprep.subr.mxu0 0.0
    %1311 = vmatpush1.msra.mxu0 %v440
    %1312 = vmatprep.subr.mxu0 0.0
    %1313 = vmatpush1.msra.mxu0 %v441
    %1314 = vmatprep.subr.mxu0 0.0
    %1315 = vmatpush1.msra.mxu0 %v442
    %1316 = vmatprep.subr.mxu0 0.0
    %1317 = vmatpush1.msra.mxu0 %v443
    %1318 = vmatprep.subr.mxu0 0.0
    %1319 = vmatpush1.msra.mxu0 %v444
    %1320 = vmatprep.subr.mxu0 0.0
    %1321 = vmatpush1.msra.mxu0 %v445
    %1322 = vmatprep.subr.mxu0 0.0
    %1323 = vmatpush1.msra.mxu0 %v446
    %1324 = vmatprep.subr.mxu0 0.0
    %1325 = vmatpush1.msra.mxu0 %v447
    %1326 = vmatprep.subr.mxu0 0.0
    %1327 = vmatpush1.msra.mxu0 %v448
    %1328 = vmatprep.subr.mxu0 0.0
    %1329 = vmatpush1.msra.mxu0 %v449
    %1330 = vmatprep.subr.mxu0 0.0
    %1331 = vmatpush1.msra.mxu0 %v450
    %1332 = vmatprep.subr.mxu0 0.0
    %1333 = vmatpush1.msra.mxu0 %v451
    %1334 = vmatprep.subr.mxu0 0.0
    %1335 = vmatpush1.msra.mxu0 %v452
    %1336 = vmatprep.subr.mxu0 0.0
    %1337 = vmatpush1.msra.mxu0 %v453
    %1338 = vmatprep.subr.mxu0 0.0
    %1339 = vmatpush1.msra.mxu0 0.0
    %1340 = vmatprep.subr.mxu0 0.0
    %1341 = vmatpush1.msra.mxu0 0.0
    %1342 = vmatprep.subr.mxu0 0.0
    %1343 = vmatpush1.msra.mxu0 0.0
    %1344 = vmatprep.subr.mxu0 0.0
    %1345 = vmatpush1.msra.mxu0 0.0
    %1346 = vmatprep.subr.mxu0 0.0
    %1347 = vmatpush1.msra.mxu0 0.0
    %1348 = vmatprep.subr.mxu0 0.0
    %1349 = vmatpush1.msra.mxu0 0.0
    %1350 = vmatprep.subr.mxu0 0.0
    %1351 = vmatpush1.msra.mxu0 0.0
    %1352 = vmatprep.subr.mxu0 0.0
    %1353 = vmatpush1.msra.mxu0 0.0
    %1354 = vmatprep.subr.mxu0 0.0
    %1355 = vmatpush1.msra.mxu0 0.0
    %1356 = vmatprep.subr.mxu0 0.0
    %1357 = vmatpush1.msra.mxu0 0.0
    %1358 = vmatprep.subr.mxu0 0.0
    %1359 = vmatpush1.msra.mxu0 0.0
    %1360 = vmatprep.subr.mxu0 0.0
    %1361 = vmatpush1.msra.mxu0 0.0
    %1362 = vmatprep.subr.mxu0 0.0
    %1363 = vmatpush1.msra.mxu0 0.0
    %1364 = vmatprep.subr.mxu0 0.0
    %1365 = vmatpush1.msra.mxu0 0.0
    %1366 = vmatprep.subr.mxu0 0.0
    %1367 = vmatpush1.msra.mxu0 0.0
    %1368 = vmatprep.subr.mxu0 0.0
    %1369 = vmatpush1.msra.mxu0 0.0
    %1370 = vmatprep.mubr.f32.mxu0 0.0
    %1371 = vmatmul.mubr.f32.gmra.mrb[0].mxu0 %v1079
    %v1372 = vpop.f32.mrb[0].mxu0
    %v1373 = vadd.f32 %v1303, %v1372
    %v1374 = vpop.f32.mrb[0].mxu0
    %1375 = vdwg.mxu0
    %v1376 = vadd.f32 %v1373, %v924
    %1377 = vst [vmem:[%s9 + $0x8] sm:$0xff] %v1376
    // Predicated region
    $region62: #{self_attention_forward.1} parent=1 // pred_check
      _
    $region63: #{self_attention_forward.1} parent=1 // pred_check_branch
      %1379 = sbr.rel (0) target = $region65
    $region64: #{self_attention_forward.1} parent=1 // pred_region
      _
    $region65: #{self_attention_forward.1} parent=1 // pred_fallthru
      _
    // Predicated region
    $region66: #{self_attention_forward.1} parent=1 // pred_check
      _
    $region67: #{self_attention_forward.1} parent=1 // pred_check_branch
      %1381 = sbr.rel (0) target = $region69
    $region68: #{self_attention_forward.1} parent=1 // pred_region
      _
    $region69: #{self_attention_forward.1} parent=1 // pred_fallthru
      _
    %1382 = vsyncpa [#allocation3], 1
    %1383 = vsyncpa [#allocation5], 1
    %1384 = vsyncpa [#allocation8], 1
    %1385 = vsyncpa [#allocation11], 1

</llo_original>
